<compile_context>
chip_gen: v7x
topology: tpu7x:2x2x1
jax: 0.10.0
libtpu: 0.0.40
codegen_flags: <defaults>
</compile_context>

<pallas_src>
import jax
import jax.numpy as jnp
from jax.experimental import pallas as pl
from jax.experimental.pallas import tpu as pltpu


def _sigmoid(x):
    return 1.0 / (1.0 + jnp.exp(-x))


def _elu(x):
    # ELU with alpha=1 (torch default); clamp exp arg for safety.
    return jnp.where(x > 0, x, jnp.exp(jnp.minimum(x, 0.0)) - 1.0)


def _round_up(x, m):
    return ((x + m - 1) // m) * m


def _lane_to_col(v):
    # (1, n) lane-major f32 -> (n, 1) per-row column.
    # Sublane-broadcast to a canonical (8, n) tile, one XLU transpose, slice.
    n = v.shape[-1]
    return jnp.transpose(jnp.broadcast_to(v, (8, n)))[:, :1]


def debias_kernel(fw_ref,    # SMEM (2,)     freq_linear weight [w0, w1]  f32
                  gate_ref,  # VMEM (1, TN)  frequency gate, lane-major   f32
                  main_ref,  # VMEM (TN, D)  main features, native dtype
                  cat_ref,   # VMEM (TN, D)  cat features, native dtype
                  time_ref,  # VMEM (TN, D)  time features, native dtype
                  wm_ref,    # VMEM (D, O)   main_mlp weight              bf16
                  bm_ref,    # VMEM (1, O)   main_mlp bias                f32
                  wot_ref,   # VMEM (D, O)   other_mlp weight (cat half)  bf16
                  wob_ref,   # VMEM (D, O)   other_mlp weight (time half) bf16
                  bo_ref,    # VMEM (1, O)   other_mlp bias               f32
                  out_ref):  # VMEM (TN, O)  output                       f32
    f32 = jnp.float32
    cdt = wm_ref.dtype                                     # bf16 MXU dtype

    # --- frequency gate, lane-dense (EUP) --------------------------------
    # weight_k = sigmoid(fw_k * (1 - g)) ** 0.5 == rsqrt(1 + exp(-fw_k*(1-g)))
    z = 1.0 - gate_ref[...]                                # (1, TN) f32
    w1 = jax.lax.rsqrt(1.0 + jnp.exp(-(z * fw_ref[0])))    # (1, TN) f32
    w2 = jax.lax.rsqrt(1.0 + jnp.exp(-(z * fw_ref[1])))    # (1, TN) f32
    w1c = _lane_to_col(w1)                                 # (TN, 1) f32
    w2c = _lane_to_col(w2)                                 # (TN, 1) f32

    # --- main branch: ELU(main @ Wm + bm) ---------------------------------
    main_h = jnp.dot(main_ref[...].astype(cdt), wm_ref[...],
                     preferred_element_type=f32) + bm_ref[...]

    # --- other branch: gate applied post-matmul, in f32 --------------------
    #   (w1*cat) @ Wo_top + (w2*time) @ Wo_bot == w1*(cat@Wo_top) + w2*(time@Wo_bot)
    cat_h = jnp.dot(cat_ref[...].astype(cdt), wot_ref[...],
                    preferred_element_type=f32)
    time_h = jnp.dot(time_ref[...].astype(cdt), wob_ref[...],
                     preferred_element_type=f32)
    other_h = w1c * cat_h + w2c * time_h + bo_ref[...]

    # TODO(synk): O=32 < 128 lanes -> masked vst + 128 B writeback minor dim;
    # a (TN,O)->(TN//4,128) lane repack (or bf16 output) would make the store
    # lane-dense, pending verification that the in-kernel reshape lowers
    # register-level on Mosaic.
    out_ref[...] = _elu(main_h) + _elu(other_h)


def debias_forward(params, traj, main_data, cat_data, time_data, user_data,
                   main_freq, *, tn=2048):
    # user_data is unused by Debias_net.forward (kept for signature parity).
    del user_data
    B, L, D = main_data.shape
    O = params["w_main"].shape[1]
    N = B * L

    # ---- glue: freq_matrix = main_freq.expand(B, -1); gather by traj -------
    freq_gate = jnp.take(main_freq, traj.reshape(-1), axis=0).astype(jnp.float32)

    # ---- row tiling: multiples of 256, cdiv grid, even-grid nudge (v7x) ----
    tn = _round_up(min(tn, N), 256)
    grid = pl.cdiv(N, tn)
    if grid > 1 and grid % 2 == 1:
        # nudge the grid even so v7x's 2 TensorCores split the parallel axis
        tn = _round_up(pl.cdiv(N, grid + 1), 256)
        grid = pl.cdiv(N, tn)
    n_rows = grid * tn

    # ---- pad ONLY the tiny gate (lane-major transport) ---------------------
    gate_lane = jnp.pad(freq_gate, (0, n_rows - N)).reshape(1, n_rows)

    # ---- features: free contiguous reshapes, native dtype, no copies -------
    main2 = main_data.reshape(N, D)
    cat2 = cat_data.reshape(N, D)
    time2 = time_data.reshape(N, D)

    # Tiny-N path only: a single block larger than the array -> pad the rows
    # (cheap, N < tn <= 2048). Big-N path keeps ragged last block, zero copies.
    if N < tn:
        pad = tn - N
        main2 = jnp.pad(main2, ((0, pad), (0, 0)))
        cat2 = jnp.pad(cat2, ((0, pad), (0, 0)))
        time2 = jnp.pad(time2, ((0, pad), (0, 0)))
        n_out = tn
    else:
        n_out = N

    # ---- weights: bf16 for the MXU, other_mlp split into cat/time halves ---
    cdtype = jnp.bfloat16
    wm = params["w_main"].astype(cdtype)
    wot = params["w_other"][:D].astype(cdtype)
    wob = params["w_other"][D:].astype(cdtype)
    bm = params["b_main"].astype(jnp.float32).reshape(1, O)
    bo = params["b_other"].astype(jnp.float32).reshape(1, O)
    fw = params["freq_w"].astype(jnp.float32).reshape(2)

    row_spec = lambda c: pl.BlockSpec((tn, c), lambda i: (i, 0))
    full_spec = lambda r, c: pl.BlockSpec((r, c), lambda i: (0, 0))

    cost = pl.CostEstimate(
        flops=int(2 * N * 3 * D * O),
        transcendentals=int(N * (2 * O + 4)),
        bytes_accessed=int(3 * N * D * main_data.dtype.itemsize
                           + N * 4 + N * O * 4
                           + 3 * D * O * 2 + 2 * O * 4 + 8))

    out = pl.pallas_call(
        debias_kernel,
        out_shape=jax.ShapeDtypeStruct((n_out, O), jnp.float32),
        grid=(grid,),
        in_specs=[
            pl.BlockSpec(memory_space=pltpu.MemorySpace.SMEM),   # freq_linear w
            pl.BlockSpec((1, tn), lambda i: (0, i)),             # gate (lane-major)
            row_spec(D),                                         # main
            row_spec(D),                                         # cat
            row_spec(D),                                         # time
            full_spec(D, O), full_spec(1, O),                    # main_mlp
            full_spec(D, O), full_spec(D, O), full_spec(1, O),   # other_mlp
        ],
        out_specs=row_spec(O),
        compiler_params=pltpu.CompilerParams(
            dimension_semantics=("parallel",),
            vmem_limit_bytes=32 * 1024 * 1024),
        cost_estimate=cost,
    )(fw, gate_lane, main2, cat2, time2, wm, bm, wot, wob, bo)

    return out[:N].reshape(B, L, O)


def reference_forward(params, traj, main_data, cat_data, time_data, user_data,
                      main_freq):
    # Pure-JAX (f32) reference mirroring the PyTorch forward.
    del user_data
    freq_gate = main_freq[traj][..., None]                         # (B, L, 1)
    main_out = _elu(main_data @ params["w_main"] + params["b_main"])
    z = 1.0 - freq_gate
    w = jnp.sqrt(_sigmoid(z * params["freq_w"]))                   # (B, L, 2)
    w1, w2 = w[..., 0:1], w[..., 1:2]
    other_in = jnp.concatenate([w1 * cat_data, w2 * time_data], axis=-1)
    other_out = _elu(other_in @ params["w_other"] + params["b_other"])
    return main_out + other_out


def init_params(key, input_dim, output_dim):
    ks = jax.random.split(key, 5)
    return {
        # Linear weights stored (in, out): y = x @ W + b (== torch x @ W.T + b)
        "w_main": 0.1 * jax.random.normal(ks[0], (input_dim, output_dim),
                                          jnp.float32),
        "b_main": 0.1 * jax.random.normal(ks[1], (1, output_dim), jnp.float32),
        "w_other": 0.1 * jax.random.normal(ks[2], (2 * input_dim, output_dim),
                                           jnp.float32),
        "b_other": 0.1 * jax.random.normal(ks[3], (1, output_dim), jnp.float32),
        # freq_linear = nn.Linear(1, 2, bias=False); weight (2, 1) -> flat (2,)
        "freq_w": jax.random.normal(ks[4], (2,), jnp.float32),
    }


def _run_case(B, L, input_dim, output_dim, freq_dim, seed, **kw):
    key = jax.random.PRNGKey(seed)
    kp, k1, k2, k3, k4, k5, k6 = jax.random.split(key, 7)

    params = init_params(kp, input_dim, output_dim)
    traj = jax.random.randint(k1, (B, L), 0, freq_dim, dtype=jnp.int32)
    main_data = jax.random.normal(k2, (B, L, input_dim), jnp.float32)
    cat_data = jax.random.normal(k3, (B, L, input_dim), jnp.float32)
    time_data = jax.random.normal(k4, (B, L, input_dim), jnp.float32)
    user_data = jax.random.normal(k5, (B, L, input_dim), jnp.float32)  # unused
    main_freq = jax.random.uniform(k6, (freq_dim,), jnp.float32)

    out = debias_forward(params, traj, main_data, cat_data, time_data,
                         user_data, main_freq, **kw)
    out = jax.block_until_ready(out)

    ref = reference_forward(params, traj, main_data, cat_data, time_data,
                            user_data, main_freq)
    assert out.shape == (B, L, output_dim)
    err = jnp.max(jnp.abs(out - ref))
    assert jnp.allclose(out, ref, atol=2e-2, rtol=2e-2), \
        f"mismatch vs reference, max abs err {err}"
    return out


if __name__ == "__main__":
    input_dim, output_dim, freq_dim = 32, 32, 16

    # Tiny default path: single (padded) block, grid=1.
    _run_case(2, 8, input_dim, output_dim, freq_dim, seed=0)

    # Multi-step grid + ragged last block (N=600, tn=256 -> grid=3,
    # last block covers rows 512..599 only).
    _run_case(3, 200, input_dim, output_dim, freq_dim, seed=0, tn=256)

    print("KERNEL_OK")
</pallas_src>

<mosaic_0001>
module attributes {stable_mosaic.version = 11 : i64} {
  func.func @debias_kernel(%arg0: i32, %arg1: memref<2xf32, #tpu.memory_space<smem>>, %arg2: memref<1x256xf32, #tpu.memory_space<vmem>>, %arg3: memref<256x32xf32, #tpu.memory_space<vmem>>, %arg4: memref<256x32xf32, #tpu.memory_space<vmem>>, %arg5: memref<256x32xf32, #tpu.memory_space<vmem>>, %arg6: memref<32x32xbf16, #tpu.memory_space<vmem>>, %arg7: memref<1x32xf32, #tpu.memory_space<vmem>>, %arg8: memref<32x32xbf16, #tpu.memory_space<vmem>>, %arg9: memref<32x32xbf16, #tpu.memory_space<vmem>>, %arg10: memref<1x32xf32, #tpu.memory_space<vmem>>, %arg11: memref<256x32xf32, #tpu.memory_space<vmem>>) attributes {dimension_semantics = [#tpu.dimension_semantics<parallel>], iteration_bounds = array<i64: 1>, scalar_prefetch = 0 : i64, scratch_operands = 0 : i64, tpu.core_type = #tpu.core_type<tc>, window_params = [{transform_indices = @transform_0, window_bounds = array<i64: 2>}, {transform_indices = @transform_1, window_bounds = array<i64: 1, 256>}, {transform_indices = @transform_2, window_bounds = array<i64: 256, 32>}, {transform_indices = @transform_3, window_bounds = array<i64: 256, 32>}, {transform_indices = @transform_4, window_bounds = array<i64: 256, 32>}, {pipeline_mode = #tpu.pipeline_mode<synchronous>, transform_indices = @transform_5, window_bounds = array<i64: 32, 32>}, {pipeline_mode = #tpu.pipeline_mode<synchronous>, transform_indices = @transform_6, window_bounds = array<i64: 1, 32>}, {pipeline_mode = #tpu.pipeline_mode<synchronous>, transform_indices = @transform_7, window_bounds = array<i64: 32, 32>}, {pipeline_mode = #tpu.pipeline_mode<synchronous>, transform_indices = @transform_8, window_bounds = array<i64: 32, 32>}, {pipeline_mode = #tpu.pipeline_mode<synchronous>, transform_indices = @transform_9, window_bounds = array<i64: 1, 32>}, {transform_indices = @transform_10, window_bounds = array<i64: 256, 32>}]} {
    %c0 = arith.constant 0 : index
    %c0_0 = arith.constant 0 : index
    %0 = vector.load %arg2[%c0, %c0_0] : memref<1x256xf32, #tpu.memory_space<vmem>>, vector<1x256xf32>
    %cst = arith.constant 1.000000e+00 : f32
    %1 = vector.broadcast %cst : f32 to vector<1x256xf32>
    %2 = arith.subf %1, %0 : vector<1x256xf32>
    %c0_1 = arith.constant 0 : index
    %3 = memref.load %arg1[%c0_1] : memref<2xf32, #tpu.memory_space<smem>>
    %4 = vector.broadcast %3 : f32 to vector<1x256xf32>
    %5 = arith.mulf %2, %4 : vector<1x256xf32>
    %cst_2 = arith.constant 0.000000e+00 : f32
    %6 = vector.broadcast %cst_2 : f32 to vector<1x256xf32>
    %7 = arith.subf %6, %5 : vector<1x256xf32>
    %8 = math.exp %7 : vector<1x256xf32>
    %cst_3 = arith.constant 1.000000e+00 : f32
    %9 = vector.broadcast %cst_3 : f32 to vector<1x256xf32>
    %10 = arith.addf %9, %8 : vector<1x256xf32>
    %11 = math.rsqrt %10 : vector<1x256xf32>
    %c1 = arith.constant 1 : index
    %12 = memref.load %arg1[%c1] : memref<2xf32, #tpu.memory_space<smem>>
    %13 = vector.broadcast %12 : f32 to vector<1x256xf32>
    %14 = arith.mulf %2, %13 : vector<1x256xf32>
    %cst_4 = arith.constant 0.000000e+00 : f32
    %15 = vector.broadcast %cst_4 : f32 to vector<1x256xf32>
    %16 = arith.subf %15, %14 : vector<1x256xf32>
    %17 = math.exp %16 : vector<1x256xf32>
    %cst_5 = arith.constant 1.000000e+00 : f32
    %18 = vector.broadcast %cst_5 : f32 to vector<1x256xf32>
    %19 = arith.addf %18, %17 : vector<1x256xf32>
    %20 = math.rsqrt %19 : vector<1x256xf32>
    %21 = vector.shape_cast %11 : vector<1x256xf32> to vector<1x256xf32>
    %22 = vector.broadcast %21 : vector<1x256xf32> to vector<8x256xf32>
    %23 = tpu.transpose %22, [1, 0] : vector<8x256xf32> -> vector<256x8xf32>
    %24 = vector.extract_strided_slice %23 {offsets = [0, 0], sizes = [256, 1], strides = [1, 1]} : vector<256x8xf32> to vector<256x1xf32>
    %25 = vector.shape_cast %20 : vector<1x256xf32> to vector<1x256xf32>
    %26 = vector.broadcast %25 : vector<1x256xf32> to vector<8x256xf32>
    %27 = tpu.transpose %26, [1, 0] : vector<8x256xf32> -> vector<256x8xf32>
    %28 = vector.extract_strided_slice %27 {offsets = [0, 0], sizes = [256, 1], strides = [1, 1]} : vector<256x8xf32> to vector<256x1xf32>
    %c0_6 = arith.constant 0 : index
    %c0_7 = arith.constant 0 : index
    %29 = vector.load %arg3[%c0_6, %c0_7] : memref<256x32xf32, #tpu.memory_space<vmem>>, vector<256x32xf32>
    %30 = arith.truncf %29 : vector<256x32xf32> to vector<256x32xbf16>
    %c0_8 = arith.constant 0 : index
    %c0_9 = arith.constant 0 : index
    %31 = vector.load %arg6[%c0_8, %c0_9] : memref<32x32xbf16, #tpu.memory_space<vmem>>, vector<32x32xbf16>
    %cst_10 = arith.constant dense<0.000000e+00> : vector<256x32xf32>
    %32 = tpu.matmul %30, %31, %cst_10 {dimension_numbers = #tpu.dot_dimension_numbers<[1], [0], [0], [1], [0, 0, 1, 1], [], []>} : vector<256x32xbf16>, vector<32x32xbf16>, vector<256x32xf32> -> vector<256x32xf32>
    %c0_11 = arith.constant 0 : index
    %c0_12 = arith.constant 0 : index
    %33 = vector.load %arg7[%c0_11, %c0_12] : memref<1x32xf32, #tpu.memory_space<vmem>>, vector<1x32xf32>
    %34 = vector.broadcast %33 : vector<1x32xf32> to vector<256x32xf32>
    %35 = arith.addf %32, %34 : vector<256x32xf32>
    %c0_13 = arith.constant 0 : index
    %c0_14 = arith.constant 0 : index
    %36 = vector.load %arg4[%c0_13, %c0_14] : memref<256x32xf32, #tpu.memory_space<vmem>>, vector<256x32xf32>
    %37 = arith.truncf %36 : vector<256x32xf32> to vector<256x32xbf16>
    %c0_15 = arith.constant 0 : index
    %c0_16 = arith.constant 0 : index
    %38 = vector.load %arg8[%c0_15, %c0_16] : memref<32x32xbf16, #tpu.memory_space<vmem>>, vector<32x32xbf16>
    %cst_17 = arith.constant dense<0.000000e+00> : vector<256x32xf32>
    %39 = tpu.matmul %37, %38, %cst_17 {dimension_numbers = #tpu.dot_dimension_numbers<[1], [0], [0], [1], [0, 0, 1, 1], [], []>} : vector<256x32xbf16>, vector<32x32xbf16>, vector<256x32xf32> -> vector<256x32xf32>
    %c0_18 = arith.constant 0 : index
    %c0_19 = arith.constant 0 : index
    %40 = vector.load %arg5[%c0_18, %c0_19] : memref<256x32xf32, #tpu.memory_space<vmem>>, vector<256x32xf32>
    %41 = arith.truncf %40 : vector<256x32xf32> to vector<256x32xbf16>
    %c0_20 = arith.constant 0 : index
    %c0_21 = arith.constant 0 : index
    %42 = vector.load %arg9[%c0_20, %c0_21] : memref<32x32xbf16, #tpu.memory_space<vmem>>, vector<32x32xbf16>
    %cst_22 = arith.constant dense<0.000000e+00> : vector<256x32xf32>
    %43 = tpu.matmul %41, %42, %cst_22 {dimension_numbers = #tpu.dot_dimension_numbers<[1], [0], [0], [1], [0, 0, 1, 1], [], []>} : vector<256x32xbf16>, vector<32x32xbf16>, vector<256x32xf32> -> vector<256x32xf32>
    %44 = vector.broadcast %24 : vector<256x1xf32> to vector<256x32xf32>
    %45 = arith.mulf %44, %39 : vector<256x32xf32>
    %46 = vector.broadcast %28 : vector<256x1xf32> to vector<256x32xf32>
    %47 = arith.mulf %46, %43 : vector<256x32xf32>
    %48 = arith.addf %45, %47 : vector<256x32xf32>
    %c0_23 = arith.constant 0 : index
    %c0_24 = arith.constant 0 : index
    %49 = vector.load %arg10[%c0_23, %c0_24] : memref<1x32xf32, #tpu.memory_space<vmem>>, vector<1x32xf32>
    %50 = vector.broadcast %49 : vector<1x32xf32> to vector<256x32xf32>
    %51 = arith.addf %48, %50 : vector<256x32xf32>
    %cst_25 = arith.constant 0.000000e+00 : f32
    %52 = vector.broadcast %cst_25 : f32 to vector<256x32xf32>
    %53 = arith.cmpf ogt, %35, %52 : vector<256x32xf32>
    %cst_26 = arith.constant 0.000000e+00 : f32
    %54 = vector.broadcast %cst_26 : f32 to vector<256x32xf32>
    %55 = arith.minimumf %35, %54 : vector<256x32xf32>
    %56 = math.exp %55 : vector<256x32xf32>
    %cst_27 = arith.constant 1.000000e+00 : f32
    %57 = vector.broadcast %cst_27 : f32 to vector<256x32xf32>
    %58 = arith.subf %56, %57 : vector<256x32xf32>
    %59 = arith.select %53, %35, %58 : vector<256x32xi1>, vector<256x32xf32>
    %cst_28 = arith.constant 0.000000e+00 : f32
    %60 = vector.broadcast %cst_28 : f32 to vector<256x32xf32>
    %61 = arith.cmpf ogt, %51, %60 : vector<256x32xf32>
    %cst_29 = arith.constant 0.000000e+00 : f32
    %62 = vector.broadcast %cst_29 : f32 to vector<256x32xf32>
    %63 = arith.minimumf %51, %62 : vector<256x32xf32>
    %64 = math.exp %63 : vector<256x32xf32>
    %cst_30 = arith.constant 1.000000e+00 : f32
    %65 = vector.broadcast %cst_30 : f32 to vector<256x32xf32>
    %66 = arith.subf %64, %65 : vector<256x32xf32>
    %67 = arith.select %61, %51, %66 : vector<256x32xi1>, vector<256x32xf32>
    %68 = arith.addf %59, %67 : vector<256x32xf32>
    %c0_31 = arith.constant 0 : index
    %c0_32 = arith.constant 0 : index
    %69 = vector.load %arg11[%c0_31, %c0_32] : memref<256x32xf32, #tpu.memory_space<vmem>>, vector<256x32xf32>
    tpu.vector_store %arg11[%c0_31, %c0_32], %68 {strides = array<i32>} : memref<256x32xf32, #tpu.memory_space<vmem>>, vector<256x32xf32>,
    return
  }
  func.func @transform_0(%arg0: i32) -> i32 {
    %c0_i32 = arith.constant 0 : i32
    %c0_i32_0 = arith.constant 0 : i32
    return %c0_i32 : i32
  }
  func.func @transform_1(%arg0: i32) -> (i32, i32) {
    %c0_i32 = arith.constant 0 : i32
    %c0_i32_0 = arith.constant 0 : i32
    return %c0_i32, %arg0 : i32, i32
  }
  func.func @transform_2(%arg0: i32) -> (i32, i32) {
    %c0_i32 = arith.constant 0 : i32
    %c0_i32_0 = arith.constant 0 : i32
    return %arg0, %c0_i32 : i32, i32
  }
  func.func @transform_3(%arg0: i32) -> (i32, i32) {
    %c0_i32 = arith.constant 0 : i32
    %c0_i32_0 = arith.constant 0 : i32
    return %arg0, %c0_i32 : i32, i32
  }
  func.func @transform_4(%arg0: i32) -> (i32, i32) {
    %c0_i32 = arith.constant 0 : i32
    %c0_i32_0 = arith.constant 0 : i32
    return %arg0, %c0_i32 : i32, i32
  }
  func.func @transform_5(%arg0: i32) -> (i32, i32) {
    %c0_i32 = arith.constant 0 : i32
    %c0_i32_0 = arith.constant 0 : i32
    %c0_i32_1 = arith.constant 0 : i32
    return %c0_i32, %c0_i32_0 : i32, i32
  }
  func.func @transform_6(%arg0: i32) -> (i32, i32) {
    %c0_i32 = arith.constant 0 : i32
    %c0_i32_0 = arith.constant 0 : i32
    %c0_i32_1 = arith.constant 0 : i32
    return %c0_i32, %c0_i32_0 : i32, i32
  }
  func.func @transform_7(%arg0: i32) -> (i32, i32) {
    %c0_i32 = arith.constant 0 : i32
    %c0_i32_0 = arith.constant 0 : i32
    %c0_i32_1 = arith.constant 0 : i32
    return %c0_i32, %c0_i32_0 : i32, i32
  }
  func.func @transform_8(%arg0: i32) -> (i32, i32) {
    %c0_i32 = arith.constant 0 : i32
    %c0_i32_0 = arith.constant 0 : i32
    %c0_i32_1 = arith.constant 0 : i32
    return %c0_i32, %c0_i32_0 : i32, i32
  }
  func.func @transform_9(%arg0: i32) -> (i32, i32) {
    %c0_i32 = arith.constant 0 : i32
    %c0_i32_0 = arith.constant 0 : i32
    %c0_i32_1 = arith.constant 0 : i32
    return %c0_i32, %c0_i32_0 : i32, i32
  }
  func.func @transform_10(%arg0: i32) -> (i32, i32) {
    %c0_i32 = arith.constant 0 : i32
    %c0_i32_0 = arith.constant 0 : i32
    return %arg0, %c0_i32 : i32, i32
  }
}

</mosaic_0001>

<llo_original>
// kernel: tpu_custom_call.1
$region0: #{tpu_custom_call.1}
  #allocation0 [shape = 'u32[]', space=smem, size = 0x4, offset = 0x4, fixed_abs, tag = 'smem constant byte address 0x4 - core index']
  #allocation1 [shape = 'u32[144,128]{1,0:T(1,128)}', space=vmem, size = 0x12000, scoped, tag = 'internal scratch']
  %s0 = inlined_call_operand.vmem [shape: f32[2], index: 0, kind: input, shape index: {}]
  %s1 = inlined_call_operand.vmem [shape: f32[1,256], index: 1, kind: input, shape index: {}]
  %s2 = inlined_call_operand.vmem [shape: f32[256,32], index: 2, kind: input, shape index: {}]
  %s3 = inlined_call_operand.vmem [shape: f32[256,32], index: 3, kind: input, shape index: {}]
  %s4 = inlined_call_operand.vmem [shape: f32[256,32], index: 4, kind: input, shape index: {}]
  %s5 = inlined_call_operand.vmem [shape: bf16[32,32], index: 5, kind: input, shape index: {}]
  %s6 = inlined_call_operand.vmem [shape: f32[1,32], index: 6, kind: input, shape index: {}]
  %s7 = inlined_call_operand.vmem [shape: bf16[32,32], index: 7, kind: input, shape index: {}]
  %s8 = inlined_call_operand.vmem [shape: bf16[32,32], index: 8, kind: input, shape index: {}]
  %s9 = inlined_call_operand.vmem [shape: f32[1,32], index: 9, kind: input, shape index: {}]
  %s10 = inlined_call_operand.vmem [shape: f32[256,32], index: 10, kind: output, shape index: {}]
  %s11 = sld [smem:[#allocation0]]
  $region54: #{tpu_custom_call.1} parent=0
    _
  %s13 = ssub.s32 1, %s11
  %s14 = scalar_select 0, %s13, %s11
  $region1: #{tpu_custom_call.1} parent=0
    #allocation2 [shape = 'u8[512]{0}', space=smem, size = 0x200, scoped, tag = 'input window, operand 0, single buffered']
    #allocation3 [shape = 's32[1]{0}', space=sflag, size = 0x4, scoped, tag = 'scoped memory for tpu_custom_call.1']
    %15 = vsyncpa [#allocation3], 0
    // Predicated region
    $region2: #{tpu_custom_call.1} parent=1 // pred_check
      _
    $region3: #{tpu_custom_call.1} parent=1 // pred_check_branch
      %17 = sbr.rel (0) target = $region5
    $region4: #{tpu_custom_call.1} parent=1 // pred_region
      %s19 = ssub.s32 16, 16
      %20 = vsyncadd [#allocation3], %s19
      %s22 = sshll.u32 %s0, 4
      %s23 = int_to_ptr.vmem [resolvable:$true] %s22
      %25 = dma.vmem_to_smem %s23, 16, [#allocation2], [#allocation3]
    $region5: #{tpu_custom_call.1} parent=1 // pred_fallthru
      _
    // Predicated region
    $region6: #{tpu_custom_call.1} parent=1 // pred_check
      _
    $region7: #{tpu_custom_call.1} parent=1 // pred_check_branch
      %27 = sbr.rel (0) target = $region9
    $region8: #{tpu_custom_call.1} parent=1 // pred_region
      _
    $region9: #{tpu_custom_call.1} parent=1 // pred_fallthru
      _
    // Predicated region
    $region10: #{tpu_custom_call.1} parent=1 // pred_check
      _
    $region11: #{tpu_custom_call.1} parent=1 // pred_check_branch
      %29 = sbr.rel (0) target = $region13
    $region12: #{tpu_custom_call.1} parent=1 // pred_region
      _
    $region13: #{tpu_custom_call.1} parent=1 // pred_fallthru
      _
    // Predicated region
    $region14: #{tpu_custom_call.1} parent=1 // pred_check
      _
    $region15: #{tpu_custom_call.1} parent=1 // pred_check_branch
      %31 = sbr.rel (0) target = $region17
    $region16: #{tpu_custom_call.1} parent=1 // pred_region
      _
    $region17: #{tpu_custom_call.1} parent=1 // pred_fallthru
      _
    // Predicated region
    $region18: #{tpu_custom_call.1} parent=1 // pred_check
      _
    $region19: #{tpu_custom_call.1} parent=1 // pred_check_branch
      %33 = sbr.rel (0) target = $region21
    $region20: #{tpu_custom_call.1} parent=1 // pred_region
      _
    $region21: #{tpu_custom_call.1} parent=1 // pred_fallthru
      _
    // Predicated region
    $region22: #{tpu_custom_call.1} parent=1 // pred_check
      _
    $region23: #{tpu_custom_call.1} parent=1 // pred_check_branch
      %35 = sbr.rel (0) target = $region25
    $region24: #{tpu_custom_call.1} parent=1 // pred_region
      _
    $region25: #{tpu_custom_call.1} parent=1 // pred_fallthru
      _
    // Predicated region
    $region26: #{tpu_custom_call.1} parent=1 // pred_check
      _
    $region27: #{tpu_custom_call.1} parent=1 // pred_check_branch
      %37 = sbr.rel (0) target = $region29
    $region28: #{tpu_custom_call.1} parent=1 // pred_region
      _
    $region29: #{tpu_custom_call.1} parent=1 // pred_fallthru
      _
    // Predicated region
    $region30: #{tpu_custom_call.1} parent=1 // pred_check
      _
    $region31: #{tpu_custom_call.1} parent=1 // pred_check_branch
      %39 = sbr.rel (0) target = $region33
    $region32: #{tpu_custom_call.1} parent=1 // pred_region
      _
    $region33: #{tpu_custom_call.1} parent=1 // pred_fallthru
      _
    // Predicated region
    $region34: #{tpu_custom_call.1} parent=1 // pred_check
      _
    $region35: #{tpu_custom_call.1} parent=1 // pred_check_branch
      %41 = sbr.rel (0) target = $region37
    $region36: #{tpu_custom_call.1} parent=1 // pred_region
      _
    $region37: #{tpu_custom_call.1} parent=1 // pred_fallthru
      _
    // Predicated region
    $region38: #{tpu_custom_call.1} parent=1 // pred_check
      _
    $region39: #{tpu_custom_call.1} parent=1 // pred_check_branch
      %43 = sbr.rel (0) target = $region41
    $region40: #{tpu_custom_call.1} parent=1 // pred_region
      _
    $region41: #{tpu_custom_call.1} parent=1 // pred_fallthru
      _
    // Predicated region
    $region42: #{tpu_custom_call.1} parent=1 // pred_check
      _
    $region43: #{tpu_custom_call.1} parent=1 // pred_check_branch
      %45 = sbr.rel (0) target = $region45
    $region44: #{tpu_custom_call.1} parent=1 // pred_region
      %46 = dma.done [#allocation3], 16
    $region45: #{tpu_custom_call.1} parent=1 // pred_fallthru
      _
    %47 = sfence
    %v49 = vld [vmem:[%s1] sm:$0x3]
    %v50 = vsub.f32 1.0, %v49
    %s51 = sld [smem:[#allocation2]]
    %v52 = vstv %s51
    %v53 = vmul.f32 %v50, %v52
    %v54 = vsub.f32 0.0, %v53
    %v55 = vmul.f32 %v54, 1.442695
    %v56 = vpow.pop %v55
    %v57 = vadd.f32 %v56, 1.0
    %v58 = vrsqrt.pop %v57
    %s59 = sld [smem:[#allocation2 + $0x1]]
    %v60 = vstv %s59
    %v61 = vmul.f32 %v50, %v60
    %v62 = vsub.f32 0.0, %v61
    %v63 = vmul.f32 %v62, 1.442695
    %v64 = vpow.pop %v63
    %v65 = vadd.f32 %v64, 1.0
    %v66 = vrsqrt.pop %v65
    %v68 = vlaneseq
    %v69 = vshrl.u32 %v68, 7
    %v70 = vsub.s32 0, %v69
    %v71 = vrot.slane %v58, %v70
    %v72 = vlaneseq
    %v73 = vshrl.u32 %v72, 7
    %v74 = vsub.s32 1, %v73
    %v75 = vrot.slane %v58, %v74
    %78 = vxpose.xlu0.b32.start [1/16] %v71, 128
    %79 = vxpose.xlu0.b32.cont [2/16] 0.0, 128
    %80 = vxpose.xlu0.b32.cont [3/16] 0.0, 128
    %81 = vxpose.xlu0.b32.cont [4/16] 0.0, 128
    %82 = vxpose.xlu0.b32.cont [5/16] 0.0, 128
    %83 = vxpose.xlu0.b32.cont [6/16] 0.0, 128
    %84 = vxpose.xlu0.b32.cont [7/16] 0.0, 128
    %85 = vxpose.xlu0.b32.cont [8/16] 0.0, 128
    %86 = vxpose.xlu0.b32.cont [9/16] 0.0, 128
    %87 = vxpose.xlu0.b32.cont [10/16] 0.0, 128
    %88 = vxpose.xlu0.b32.cont [11/16] 0.0, 128
    %89 = vxpose.xlu0.b32.cont [12/16] 0.0, 128
    %90 = vxpose.xlu0.b32.cont [13/16] 0.0, 128
    %91 = vxpose.xlu0.b32.cont [14/16] 0.0, 128
    %92 = vxpose.xlu0.b32.cont [15/16] 0.0, 128
    %93 = vxpose.xlu0.b32.end [16/16] 0.0, 128
    %v94 = vpop.trf.xlu0
    %v95 = vpop.trf.xlu0
    %v96 = vpop.trf.xlu0
    %v97 = vpop.trf.xlu0
    %v98 = vpop.trf.xlu0
    %v99 = vpop.trf.xlu0
    %v100 = vpop.trf.xlu0
    %v101 = vpop.trf.xlu0
    %v102 = vpop.trf.xlu0
    %v103 = vpop.trf.xlu0
    %v104 = vpop.trf.xlu0
    %v105 = vpop.trf.xlu0
    %v106 = vpop.trf.xlu0
    %v107 = vpop.trf.xlu0
    %v108 = vpop.trf.xlu0
    %v109 = vpop.trf.xlu0
    %110 = vxpose.xlu0.b32.start [1/16] %v75, 128
    %111 = vxpose.xlu0.b32.cont [2/16] 0.0, 128
    %112 = vxpose.xlu0.b32.cont [3/16] 0.0, 128
    %113 = vxpose.xlu0.b32.cont [4/16] 0.0, 128
    %114 = vxpose.xlu0.b32.cont [5/16] 0.0, 128
    %115 = vxpose.xlu0.b32.cont [6/16] 0.0, 128
    %116 = vxpose.xlu0.b32.cont [7/16] 0.0, 128
    %117 = vxpose.xlu0.b32.cont [8/16] 0.0, 128
    %118 = vxpose.xlu0.b32.cont [9/16] 0.0, 128
    %119 = vxpose.xlu0.b32.cont [10/16] 0.0, 128
    %120 = vxpose.xlu0.b32.cont [11/16] 0.0, 128
    %121 = vxpose.xlu0.b32.cont [12/16] 0.0, 128
    %122 = vxpose.xlu0.b32.cont [13/16] 0.0, 128
    %123 = vxpose.xlu0.b32.cont [14/16] 0.0, 128
    %124 = vxpose.xlu0.b32.cont [15/16] 0.0, 128
    %125 = vxpose.xlu0.b32.end [16/16] 0.0, 128
    %v126 = vpop.trf.xlu0
    %v127 = vpop.trf.xlu0
    %v128 = vpop.trf.xlu0
    %v129 = vpop.trf.xlu0
    %v130 = vpop.trf.xlu0
    %v131 = vpop.trf.xlu0
    %v132 = vpop.trf.xlu0
    %v133 = vpop.trf.xlu0
    %v134 = vpop.trf.xlu0
    %v135 = vpop.trf.xlu0
    %v136 = vpop.trf.xlu0
    %v137 = vpop.trf.xlu0
    %v138 = vpop.trf.xlu0
    %v139 = vpop.trf.xlu0
    %v140 = vpop.trf.xlu0
    %v141 = vpop.trf.xlu0
    %v143 = vlaneseq
    %v144 = vshrl.u32 %v143, 7
    %v145 = vsub.s32 0, %v144
    %v146 = vrot.slane %v66, %v145
    %v147 = vlaneseq
    %v148 = vshrl.u32 %v147, 7
    %v149 = vsub.s32 1, %v148
    %v150 = vrot.slane %v66, %v149
    %153 = vxpose.xlu0.b32.start [1/16] %v146, 128
    %154 = vxpose.xlu0.b32.cont [2/16] 0.0, 128
    %155 = vxpose.xlu0.b32.cont [3/16] 0.0, 128
    %156 = vxpose.xlu0.b32.cont [4/16] 0.0, 128
    %157 = vxpose.xlu0.b32.cont [5/16] 0.0, 128
    %158 = vxpose.xlu0.b32.cont [6/16] 0.0, 128
    %159 = vxpose.xlu0.b32.cont [7/16] 0.0, 128
    %160 = vxpose.xlu0.b32.cont [8/16] 0.0, 128
    %161 = vxpose.xlu0.b32.cont [9/16] 0.0, 128
    %162 = vxpose.xlu0.b32.cont [10/16] 0.0, 128
    %163 = vxpose.xlu0.b32.cont [11/16] 0.0, 128
    %164 = vxpose.xlu0.b32.cont [12/16] 0.0, 128
    %165 = vxpose.xlu0.b32.cont [13/16] 0.0, 128
    %166 = vxpose.xlu0.b32.cont [14/16] 0.0, 128
    %167 = vxpose.xlu0.b32.cont [15/16] 0.0, 128
    %168 = vxpose.xlu0.b32.end [16/16] 0.0, 128
    %v169 = vpop.trf.xlu0
    %v170 = vpop.trf.xlu0
    %v171 = vpop.trf.xlu0
    %v172 = vpop.trf.xlu0
    %v173 = vpop.trf.xlu0
    %v174 = vpop.trf.xlu0
    %v175 = vpop.trf.xlu0
    %v176 = vpop.trf.xlu0
    %v177 = vpop.trf.xlu0
    %v178 = vpop.trf.xlu0
    %v179 = vpop.trf.xlu0
    %v180 = vpop.trf.xlu0
    %v181 = vpop.trf.xlu0
    %v182 = vpop.trf.xlu0
    %v183 = vpop.trf.xlu0
    %v184 = vpop.trf.xlu0
    %185 = vxpose.xlu0.b32.start [1/16] %v150, 128
    %186 = vxpose.xlu0.b32.cont [2/16] 0.0, 128
    %187 = vxpose.xlu0.b32.cont [3/16] 0.0, 128
    %188 = vxpose.xlu0.b32.cont [4/16] 0.0, 128
    %189 = vxpose.xlu0.b32.cont [5/16] 0.0, 128
    %190 = vxpose.xlu0.b32.cont [6/16] 0.0, 128
    %191 = vxpose.xlu0.b32.cont [7/16] 0.0, 128
    %192 = vxpose.xlu0.b32.cont [8/16] 0.0, 128
    %193 = vxpose.xlu0.b32.cont [9/16] 0.0, 128
    %194 = vxpose.xlu0.b32.cont [10/16] 0.0, 128
    %195 = vxpose.xlu0.b32.cont [11/16] 0.0, 128
    %196 = vxpose.xlu0.b32.cont [12/16] 0.0, 128
    %197 = vxpose.xlu0.b32.cont [13/16] 0.0, 128
    %198 = vxpose.xlu0.b32.cont [14/16] 0.0, 128
    %199 = vxpose.xlu0.b32.cont [15/16] 0.0, 128
    %200 = vxpose.xlu0.b32.end [16/16] 0.0, 128
    %v201 = vpop.trf.xlu0
    %v202 = vpop.trf.xlu0
    %v203 = vpop.trf.xlu0
    %v204 = vpop.trf.xlu0
    %v205 = vpop.trf.xlu0
    %v206 = vpop.trf.xlu0
    %v207 = vpop.trf.xlu0
    %v208 = vpop.trf.xlu0
    %v209 = vpop.trf.xlu0
    %v210 = vpop.trf.xlu0
    %v211 = vpop.trf.xlu0
    %v212 = vpop.trf.xlu0
    %v213 = vpop.trf.xlu0
    %v214 = vpop.trf.xlu0
    %v215 = vpop.trf.xlu0
    %v216 = vpop.trf.xlu0
    %v217 = vld [vmem:[%s2] sm:$0xff]
    %v218 = vld [vmem:[%s2 + $0x8] sm:$0xff]
    %v219 = vld [vmem:[%s2 + $0x10] sm:$0xff]
    %v220 = vld [vmem:[%s2 + $0x18] sm:$0xff]
    %v221 = vld [vmem:[%s2 + $0x20] sm:$0xff]
    %v222 = vld [vmem:[%s2 + $0x28] sm:$0xff]
    %v223 = vld [vmem:[%s2 + $0x30] sm:$0xff]
    %v224 = vld [vmem:[%s2 + $0x38] sm:$0xff]
    %v225 = vld [vmem:[%s2 + $0x40] sm:$0xff]
    %v226 = vld [vmem:[%s2 + $0x48] sm:$0xff]
    %v227 = vld [vmem:[%s2 + $0x50] sm:$0xff]
    %v228 = vld [vmem:[%s2 + $0x58] sm:$0xff]
    %v229 = vld [vmem:[%s2 + $0x60] sm:$0xff]
    %v230 = vld [vmem:[%s2 + $0x68] sm:$0xff]
    %v231 = vld [vmem:[%s2 + $0x70] sm:$0xff]
    %v232 = vld [vmem:[%s2 + $0x78] sm:$0xff]
    %v233 = vld [vmem:[%s2 + $0x80] sm:$0xff]
    %v234 = vld [vmem:[%s2 + $0x88] sm:$0xff]
    %v235 = vld [vmem:[%s2 + $0x90] sm:$0xff]
    %v236 = vld [vmem:[%s2 + $0x98] sm:$0xff]
    %v237 = vld [vmem:[%s2 + $0xa0] sm:$0xff]
    %v238 = vld [vmem:[%s2 + $0xa8] sm:$0xff]
    %v239 = vld [vmem:[%s2 + $0xb0] sm:$0xff]
    %v240 = vld [vmem:[%s2 + $0xb8] sm:$0xff]
    %v241 = vld [vmem:[%s2 + $0xc0] sm:$0xff]
    %v242 = vld [vmem:[%s2 + $0xc8] sm:$0xff]
    %v243 = vld [vmem:[%s2 + $0xd0] sm:$0xff]
    %v244 = vld [vmem:[%s2 + $0xd8] sm:$0xff]
    %v245 = vld [vmem:[%s2 + $0xe0] sm:$0xff]
    %v246 = vld [vmem:[%s2 + $0xe8] sm:$0xff]
    %v247 = vld [vmem:[%s2 + $0xf0] sm:$0xff]
    %v248 = vld [vmem:[%s2 + $0xf8] sm:$0xff]
    %v249 = vpack.c.bf16 %v218, %v217
    %v250 = vpack.c.bf16 %v220, %v219
    %v251 = vpack.c.bf16 %v222, %v221
    %v252 = vpack.c.bf16 %v224, %v223
    %v253 = vpack.c.bf16 %v226, %v225
    %v254 = vpack.c.bf16 %v228, %v227
    %v255 = vpack.c.bf16 %v230, %v229
    %v256 = vpack.c.bf16 %v232, %v231
    %v257 = vpack.c.bf16 %v234, %v233
    %v258 = vpack.c.bf16 %v236, %v235
    %v259 = vpack.c.bf16 %v238, %v237
    %v260 = vpack.c.bf16 %v240, %v239
    %v261 = vpack.c.bf16 %v242, %v241
    %v262 = vpack.c.bf16 %v244, %v243
    %v263 = vpack.c.bf16 %v246, %v245
    %v264 = vpack.c.bf16 %v248, %v247
    %v265 = vld [vmem:[%s5] sm:$0xf]
    %v266 = vld [vmem:[%s5 + $0x4] sm:$0xf]
    %v267 = vld [vmem:[%s5 + $0x8] sm:$0xf]
    %v268 = vld [vmem:[%s5 + $0xc] sm:$0xf]
    %v269 = vld [vmem:[%s6] sm:$0x1]
    %v271 = vlaneseq
    %v272 = vshrl.u32 %v271, 7
    %v273 = vsub.s32 0, %v272
    %v274 = vrot.slane %v269, %v273
    %v280 = vunpack.c.l.b16 %v265
    %v281 = vunpack.c.l.b16 %v266
    %v282 = vunpack.c.l.b16 %v267
    %v283 = vunpack.c.l.b16 %v268
    %v284 = vpack.c.b16 %v281, %v280
    %v285 = vpack.c.b16 %v283, %v282
    %vm288 = vcmask 261120
    %v290 = vsel %vm288, %v249, 0
    %v293 = vsel %vm288, %v250, 0
    %v296 = vsel %vm288, %v251, 0
    %v299 = vsel %vm288, %v252, 0
    %v302 = vsel %vm288, %v253, 0
    %v305 = vsel %vm288, %v254, 0
    %v308 = vsel %vm288, %v255, 0
    %v311 = vsel %vm288, %v256, 0
    %v314 = vsel %vm288, %v257, 0
    %v317 = vsel %vm288, %v258, 0
    %v320 = vsel %vm288, %v259, 0
    %v323 = vsel %vm288, %v260, 0
    %v326 = vsel %vm288, %v261, 0
    %v329 = vsel %vm288, %v262, 0
    %v332 = vsel %vm288, %v263, 0
    %v335 = vsel %vm288, %v264, 0
    %337 = vmatprep.subr.bf16.mxu0 0
    %338 = vmatpush1.bf16.msra.mxu0 %v284
    %339 = vmatprep.subr.bf16.mxu0 0
    %340 = vmatpush1.bf16.msra.mxu0 %v285
    %341 = vmatprep.subr.bf16.mxu0 0
    %342 = vmatpush1.bf16.msra.mxu0 0
    %343 = vmatprep.subr.bf16.mxu0 0
    %344 = vmatpush1.bf16.msra.mxu0 0
    %345 = vmatprep.subr.bf16.mxu0 0
    %346 = vmatpush1.bf16.msra.mxu0 0
    %347 = vmatprep.subr.bf16.mxu0 0
    %348 = vmatpush1.bf16.msra.mxu0 0
    %349 = vmatprep.subr.bf16.mxu0 0
    %350 = vmatpush1.bf16.msra.mxu0 0
    %351 = vmatprep.subr.bf16.mxu0 0
    %352 = vmatpush1.bf16.msra.mxu0 0
    %353 = vmatprep.subr.bf16.mxu0 0
    %354 = vmatpush1.bf16.msra.mxu0 0
    %355 = vmatprep.subr.bf16.mxu0 0
    %356 = vmatpush1.bf16.msra.mxu0 0
    %357 = vmatprep.subr.bf16.mxu0 0
    %358 = vmatpush1.bf16.msra.mxu0 0
    %359 = vmatprep.subr.bf16.mxu0 0
    %360 = vmatpush1.bf16.msra.mxu0 0
    %361 = vmatprep.subr.bf16.mxu0 0
    %362 = vmatpush1.bf16.msra.mxu0 0
    %363 = vmatprep.subr.bf16.mxu0 0
    %364 = vmatpush1.bf16.msra.mxu0 0
    %365 = vmatprep.subr.bf16.mxu0 0
    %366 = vmatpush1.bf16.msra.mxu0 0
    %367 = vmatprep.subr.bf16.mxu0 0
    %368 = vmatpush1.bf16.msra.mxu0 0
    %369 = vmatprep.mubr.bf16.mxu0 0
    %370 = vmatmul.mubr.bf16.gmra.mrb[0].mxu0 %v290
    %v371 = vpop.f32.mrb[0].mxu0
    %v372 = vadd.f32 %v274, %v371
    %v373 = vpop.f32.mrb[0].mxu0
    %v374 = vpop.f32.mrb[0].mxu0
    %v375 = vadd.f32 %v274, %v374
    %v376 = vpop.f32.mrb[0].mxu0
    %377 = vmatprep.mubr.bf16.mxu0 0
    %378 = vmatmul.mubr.bf16.gmra.mrb[0].mxu0 %v293
    %v379 = vpop.f32.mrb[0].mxu0
    %v380 = vadd.f32 %v274, %v379
    %v381 = vpop.f32.mrb[0].mxu0
    %v382 = vpop.f32.mrb[0].mxu0
    %v383 = vadd.f32 %v274, %v382
    %v384 = vpop.f32.mrb[0].mxu0
    %385 = vmatprep.mubr.bf16.mxu0 0
    %386 = vmatmul.mubr.bf16.gmra.mrb[0].mxu0 %v296
    %v387 = vpop.f32.mrb[0].mxu0
    %v388 = vadd.f32 %v274, %v387
    %v389 = vpop.f32.mrb[0].mxu0
    %v390 = vpop.f32.mrb[0].mxu0
    %v391 = vadd.f32 %v274, %v390
    %v392 = vpop.f32.mrb[0].mxu0
    %393 = vmatprep.mubr.bf16.mxu0 0
    %394 = vmatmul.mubr.bf16.gmra.mrb[0].mxu0 %v299
    %v395 = vpop.f32.mrb[0].mxu0
    %v396 = vadd.f32 %v274, %v395
    %v397 = vpop.f32.mrb[0].mxu0
    %v398 = vpop.f32.mrb[0].mxu0
    %v399 = vadd.f32 %v274, %v398
    %v400 = vpop.f32.mrb[0].mxu0
    %401 = vmatprep.mubr.bf16.mxu0 0
    %402 = vmatmul.mubr.bf16.gmra.mrb[0].mxu0 %v302
    %v403 = vpop.f32.mrb[0].mxu0
    %v404 = vadd.f32 %v274, %v403
    %v405 = vpop.f32.mrb[0].mxu0
    %v406 = vpop.f32.mrb[0].mxu0
    %v407 = vadd.f32 %v274, %v406
    %v408 = vpop.f32.mrb[0].mxu0
    %409 = vmatprep.mubr.bf16.mxu0 0
    %410 = vmatmul.mubr.bf16.gmra.mrb[0].mxu0 %v305
    %v411 = vpop.f32.mrb[0].mxu0
    %v412 = vadd.f32 %v274, %v411
    %v413 = vpop.f32.mrb[0].mxu0
    %v414 = vpop.f32.mrb[0].mxu0
    %v415 = vadd.f32 %v274, %v414
    %v416 = vpop.f32.mrb[0].mxu0
    %417 = vmatprep.mubr.bf16.mxu0 0
    %418 = vmatmul.mubr.bf16.gmra.mrb[0].mxu0 %v308
    %v419 = vpop.f32.mrb[0].mxu0
    %v420 = vadd.f32 %v274, %v419
    %v421 = vpop.f32.mrb[0].mxu0
    %v422 = vpop.f32.mrb[0].mxu0
    %v423 = vadd.f32 %v274, %v422
    %v424 = vpop.f32.mrb[0].mxu0
    %425 = vmatprep.mubr.bf16.mxu0 0
    %426 = vmatmul.mubr.bf16.gmra.mrb[0].mxu0 %v311
    %v427 = vpop.f32.mrb[0].mxu0
    %v428 = vadd.f32 %v274, %v427
    %v429 = vpop.f32.mrb[0].mxu0
    %v430 = vpop.f32.mrb[0].mxu0
    %v431 = vadd.f32 %v274, %v430
    %v432 = vpop.f32.mrb[0].mxu0
    %433 = vmatprep.mubr.bf16.mxu0 0
    %434 = vmatmul.mubr.bf16.gmra.mrb[0].mxu0 %v314
    %v435 = vpop.f32.mrb[0].mxu0
    %v436 = vadd.f32 %v274, %v435
    %v437 = vpop.f32.mrb[0].mxu0
    %v438 = vpop.f32.mrb[0].mxu0
    %v439 = vadd.f32 %v274, %v438
    %v440 = vpop.f32.mrb[0].mxu0
    %441 = vmatprep.mubr.bf16.mxu0 0
    %442 = vmatmul.mubr.bf16.gmra.mrb[0].mxu0 %v317
    %v443 = vpop.f32.mrb[0].mxu0
    %v444 = vadd.f32 %v274, %v443
    %v445 = vpop.f32.mrb[0].mxu0
    %v446 = vpop.f32.mrb[0].mxu0
    %v447 = vadd.f32 %v274, %v446
    %v448 = vpop.f32.mrb[0].mxu0
    %449 = vmatprep.mubr.bf16.mxu0 0
    %450 = vmatmul.mubr.bf16.gmra.mrb[0].mxu0 %v320
    %v451 = vpop.f32.mrb[0].mxu0
    %v452 = vadd.f32 %v274, %v451
    %v453 = vpop.f32.mrb[0].mxu0
    %v454 = vpop.f32.mrb[0].mxu0
    %v455 = vadd.f32 %v274, %v454
    %v456 = vpop.f32.mrb[0].mxu0
    %457 = vmatprep.mubr.bf16.mxu0 0
    %458 = vmatmul.mubr.bf16.gmra.mrb[0].mxu0 %v323
    %v459 = vpop.f32.mrb[0].mxu0
    %v460 = vadd.f32 %v274, %v459
    %v461 = vpop.f32.mrb[0].mxu0
    %v462 = vpop.f32.mrb[0].mxu0
    %v463 = vadd.f32 %v274, %v462
    %v464 = vpop.f32.mrb[0].mxu0
    %465 = vmatprep.mubr.bf16.mxu0 0
    %466 = vmatmul.mubr.bf16.gmra.mrb[0].mxu0 %v326
    %v467 = vpop.f32.mrb[0].mxu0
    %v468 = vadd.f32 %v274, %v467
    %v469 = vpop.f32.mrb[0].mxu0
    %v470 = vpop.f32.mrb[0].mxu0
    %v471 = vadd.f32 %v274, %v470
    %v472 = vpop.f32.mrb[0].mxu0
    %473 = vmatprep.mubr.bf16.mxu0 0
    %474 = vmatmul.mubr.bf16.gmra.mrb[0].mxu0 %v329
    %v475 = vpop.f32.mrb[0].mxu0
    %v476 = vadd.f32 %v274, %v475
    %v477 = vpop.f32.mrb[0].mxu0
    %v478 = vpop.f32.mrb[0].mxu0
    %v479 = vadd.f32 %v274, %v478
    %v480 = vpop.f32.mrb[0].mxu0
    %481 = vmatprep.mubr.bf16.mxu0 0
    %482 = vmatmul.mubr.bf16.gmra.mrb[0].mxu0 %v332
    %v483 = vpop.f32.mrb[0].mxu0
    %v484 = vadd.f32 %v274, %v483
    %v485 = vpop.f32.mrb[0].mxu0
    %v486 = vpop.f32.mrb[0].mxu0
    %v487 = vadd.f32 %v274, %v486
    %v488 = vpop.f32.mrb[0].mxu0
    %489 = vmatprep.mubr.bf16.mxu0 0
    %490 = vmatmul.mubr.bf16.gmra.mrb[0].mxu0 %v335
    %v491 = vpop.f32.mrb[0].mxu0
    %v492 = vadd.f32 %v274, %v491
    %v493 = vpop.f32.mrb[0].mxu0
    %v494 = vpop.f32.mrb[0].mxu0
    %v495 = vadd.f32 %v274, %v494
    %v496 = vpop.f32.mrb[0].mxu0
    %497 = vdwg.mxu0
    %v498 = vld [vmem:[%s3] sm:$0xff]
    %v499 = vld [vmem:[%s3 + $0x8] sm:$0xff]
    %v500 = vld [vmem:[%s3 + $0x10] sm:$0xff]
    %v501 = vld [vmem:[%s3 + $0x18] sm:$0xff]
    %v502 = vld [vmem:[%s3 + $0x20] sm:$0xff]
    %v503 = vld [vmem:[%s3 + $0x28] sm:$0xff]
    %v504 = vld [vmem:[%s3 + $0x30] sm:$0xff]
    %v505 = vld [vmem:[%s3 + $0x38] sm:$0xff]
    %v506 = vld [vmem:[%s3 + $0x40] sm:$0xff]
    %v507 = vld [vmem:[%s3 + $0x48] sm:$0xff]
    %v508 = vld [vmem:[%s3 + $0x50] sm:$0xff]
    %v509 = vld [vmem:[%s3 + $0x58] sm:$0xff]
    %v510 = vld [vmem:[%s3 + $0x60] sm:$0xff]
    %v511 = vld [vmem:[%s3 + $0x68] sm:$0xff]
    %v512 = vld [vmem:[%s3 + $0x70] sm:$0xff]
    %v513 = vld [vmem:[%s3 + $0x78] sm:$0xff]
    %v514 = vld [vmem:[%s3 + $0x80] sm:$0xff]
    %v515 = vld [vmem:[%s3 + $0x88] sm:$0xff]
    %v516 = vld [vmem:[%s3 + $0x90] sm:$0xff]
    %v517 = vld [vmem:[%s3 + $0x98] sm:$0xff]
    %v518 = vld [vmem:[%s3 + $0xa0] sm:$0xff]
    %v519 = vld [vmem:[%s3 + $0xa8] sm:$0xff]
    %v520 = vld [vmem:[%s3 + $0xb0] sm:$0xff]
    %v521 = vld [vmem:[%s3 + $0xb8] sm:$0xff]
    %v522 = vld [vmem:[%s3 + $0xc0] sm:$0xff]
    %v523 = vld [vmem:[%s3 + $0xc8] sm:$0xff]
    %v524 = vld [vmem:[%s3 + $0xd0] sm:$0xff]
    %v525 = vld [vmem:[%s3 + $0xd8] sm:$0xff]
    %v526 = vld [vmem:[%s3 + $0xe0] sm:$0xff]
    %v527 = vld [vmem:[%s3 + $0xe8] sm:$0xff]
    %v528 = vld [vmem:[%s3 + $0xf0] sm:$0xff]
    %v529 = vld [vmem:[%s3 + $0xf8] sm:$0xff]
    %v530 = vpack.c.bf16 %v499, %v498
    %v531 = vpack.c.bf16 %v501, %v500
    %v532 = vpack.c.bf16 %v503, %v502
    %v533 = vpack.c.bf16 %v505, %v504
    %v534 = vpack.c.bf16 %v507, %v506
    %v535 = vpack.c.bf16 %v509, %v508
    %v536 = vpack.c.bf16 %v511, %v510
    %v537 = vpack.c.bf16 %v513, %v512
    %v538 = vpack.c.bf16 %v515, %v514
    %v539 = vpack.c.bf16 %v517, %v516
    %v540 = vpack.c.bf16 %v519, %v518
    %v541 = vpack.c.bf16 %v521, %v520
    %v542 = vpack.c.bf16 %v523, %v522
    %v543 = vpack.c.bf16 %v525, %v524
    %v544 = vpack.c.bf16 %v527, %v526
    %v545 = vpack.c.bf16 %v529, %v528
    %v546 = vld [vmem:[%s7] sm:$0xf]
    %v547 = vld [vmem:[%s7 + $0x4] sm:$0xf]
    %v548 = vld [vmem:[%s7 + $0x8] sm:$0xf]
    %v549 = vld [vmem:[%s7 + $0xc] sm:$0xf]
    %v554 = vunpack.c.l.b16 %v546
    %v555 = vunpack.c.l.b16 %v547
    %v556 = vunpack.c.l.b16 %v548
    %v557 = vunpack.c.l.b16 %v549
    %v558 = vpack.c.b16 %v555, %v554
    %v559 = vpack.c.b16 %v557, %v556
    %v563 = vsel %vm288, %v530, 0
    %v566 = vsel %vm288, %v531, 0
    %v569 = vsel %vm288, %v532, 0
    %v572 = vsel %vm288, %v533, 0
    %v575 = vsel %vm288, %v534, 0
    %v578 = vsel %vm288, %v535, 0
    %v581 = vsel %vm288, %v536, 0
    %v584 = vsel %vm288, %v537, 0
    %v587 = vsel %vm288, %v538, 0
    %v590 = vsel %vm288, %v539, 0
    %v593 = vsel %vm288, %v540, 0
    %v596 = vsel %vm288, %v541, 0
    %v599 = vsel %vm288, %v542, 0
    %v602 = vsel %vm288, %v543, 0
    %v605 = vsel %vm288, %v544, 0
    %v608 = vsel %vm288, %v545, 0
    %610 = vmatprep.subr.bf16.mxu0 0
    %611 = vmatpush1.bf16.msra.mxu0 %v558
    %612 = vmatprep.subr.bf16.mxu0 0
    %613 = vmatpush1.bf16.msra.mxu0 %v559
    %614 = vmatprep.subr.bf16.mxu0 0
    %615 = vmatpush1.bf16.msra.mxu0 0
    %616 = vmatprep.subr.bf16.mxu0 0
    %617 = vmatpush1.bf16.msra.mxu0 0
    %618 = vmatprep.subr.bf16.mxu0 0
    %619 = vmatpush1.bf16.msra.mxu0 0
    %620 = vmatprep.subr.bf16.mxu0 0
    %621 = vmatpush1.bf16.msra.mxu0 0
    %622 = vmatprep.subr.bf16.mxu0 0
    %623 = vmatpush1.bf16.msra.mxu0 0
    %624 = vmatprep.subr.bf16.mxu0 0
    %625 = vmatpush1.bf16.msra.mxu0 0
    %626 = vmatprep.subr.bf16.mxu0 0
    %627 = vmatpush1.bf16.msra.mxu0 0
    %628 = vmatprep.subr.bf16.mxu0 0
    %629 = vmatpush1.bf16.msra.mxu0 0
    %630 = vmatprep.subr.bf16.mxu0 0
    %631 = vmatpush1.bf16.msra.mxu0 0
    %632 = vmatprep.subr.bf16.mxu0 0
    %633 = vmatpush1.bf16.msra.mxu0 0
    %634 = vmatprep.subr.bf16.mxu0 0
    %635 = vmatpush1.bf16.msra.mxu0 0
    %636 = vmatprep.subr.bf16.mxu0 0
    %637 = vmatpush1.bf16.msra.mxu0 0
    %638 = vmatprep.subr.bf16.mxu0 0
    %639 = vmatpush1.bf16.msra.mxu0 0
    %640 = vmatprep.subr.bf16.mxu0 0
    %641 = vmatpush1.bf16.msra.mxu0 0
    %642 = vmatprep.mubr.bf16.mxu0 0
    %643 = vmatmul.mubr.bf16.gmra.mrb[0].mxu0 %v563
    %v644 = vpop.f32.mrb[0].mxu0
    %v645 = vadd.f32 0.0, %v644
    %v646 = vpop.f32.mrb[0].mxu0
    %v647 = vpop.f32.mrb[0].mxu0
    %v648 = vadd.f32 0.0, %v647
    %v649 = vpop.f32.mrb[0].mxu0
    %650 = vmatprep.mubr.bf16.mxu0 0
    %651 = vmatmul.mubr.bf16.gmra.mrb[0].mxu0 %v566
    %v652 = vpop.f32.mrb[0].mxu0
    %v653 = vadd.f32 0.0, %v652
    %v654 = vpop.f32.mrb[0].mxu0
    %v655 = vpop.f32.mrb[0].mxu0
    %v656 = vadd.f32 0.0, %v655
    %v657 = vpop.f32.mrb[0].mxu0
    %658 = vmatprep.mubr.bf16.mxu0 0
    %659 = vmatmul.mubr.bf16.gmra.mrb[0].mxu0 %v569
    %v660 = vpop.f32.mrb[0].mxu0
    %v661 = vadd.f32 0.0, %v660
    %v662 = vpop.f32.mrb[0].mxu0
    %v663 = vpop.f32.mrb[0].mxu0
    %v664 = vadd.f32 0.0, %v663
    %v665 = vpop.f32.mrb[0].mxu0
    %666 = vmatprep.mubr.bf16.mxu0 0
    %667 = vmatmul.mubr.bf16.gmra.mrb[0].mxu0 %v572
    %v668 = vpop.f32.mrb[0].mxu0
    %v669 = vadd.f32 0.0, %v668
    %v670 = vpop.f32.mrb[0].mxu0
    %v671 = vpop.f32.mrb[0].mxu0
    %v672 = vadd.f32 0.0, %v671
    %v673 = vpop.f32.mrb[0].mxu0
    %674 = vmatprep.mubr.bf16.mxu0 0
    %675 = vmatmul.mubr.bf16.gmra.mrb[0].mxu0 %v575
    %v676 = vpop.f32.mrb[0].mxu0
    %v677 = vadd.f32 0.0, %v676
    %v678 = vpop.f32.mrb[0].mxu0
    %v679 = vpop.f32.mrb[0].mxu0
    %v680 = vadd.f32 0.0, %v679
    %v681 = vpop.f32.mrb[0].mxu0
    %682 = vmatprep.mubr.bf16.mxu0 0
    %683 = vmatmul.mubr.bf16.gmra.mrb[0].mxu0 %v578
    %v684 = vpop.f32.mrb[0].mxu0
    %v685 = vadd.f32 0.0, %v684
    %v686 = vpop.f32.mrb[0].mxu0
    %v687 = vpop.f32.mrb[0].mxu0
    %v688 = vadd.f32 0.0, %v687
    %v689 = vpop.f32.mrb[0].mxu0
    %690 = vmatprep.mubr.bf16.mxu0 0
    %691 = vmatmul.mubr.bf16.gmra.mrb[0].mxu0 %v581
    %v692 = vpop.f32.mrb[0].mxu0
    %v693 = vadd.f32 0.0, %v692
    %v694 = vpop.f32.mrb[0].mxu0
    %v695 = vpop.f32.mrb[0].mxu0
    %v696 = vadd.f32 0.0, %v695
    %v697 = vpop.f32.mrb[0].mxu0
    %698 = vmatprep.mubr.bf16.mxu0 0
    %699 = vmatmul.mubr.bf16.gmra.mrb[0].mxu0 %v584
    %v700 = vpop.f32.mrb[0].mxu0
    %v701 = vadd.f32 0.0, %v700
    %v702 = vpop.f32.mrb[0].mxu0
    %v703 = vpop.f32.mrb[0].mxu0
    %v704 = vadd.f32 0.0, %v703
    %v705 = vpop.f32.mrb[0].mxu0
    %706 = vmatprep.mubr.bf16.mxu0 0
    %707 = vmatmul.mubr.bf16.gmra.mrb[0].mxu0 %v587
    %v708 = vpop.f32.mrb[0].mxu0
    %v709 = vadd.f32 0.0, %v708
    %v710 = vpop.f32.mrb[0].mxu0
    %v711 = vpop.f32.mrb[0].mxu0
    %v712 = vadd.f32 0.0, %v711
    %v713 = vpop.f32.mrb[0].mxu0
    %714 = vmatprep.mubr.bf16.mxu0 0
    %715 = vmatmul.mubr.bf16.gmra.mrb[0].mxu0 %v590
    %v716 = vpop.f32.mrb[0].mxu0
    %v717 = vadd.f32 0.0, %v716
    %v718 = vpop.f32.mrb[0].mxu0
    %v719 = vpop.f32.mrb[0].mxu0
    %v720 = vadd.f32 0.0, %v719
    %v721 = vpop.f32.mrb[0].mxu0
    %722 = vmatprep.mubr.bf16.mxu0 0
    %723 = vmatmul.mubr.bf16.gmra.mrb[0].mxu0 %v593
    %v724 = vpop.f32.mrb[0].mxu0
    %v725 = vadd.f32 0.0, %v724
    %v726 = vpop.f32.mrb[0].mxu0
    %v727 = vpop.f32.mrb[0].mxu0
    %v728 = vadd.f32 0.0, %v727
    %v729 = vpop.f32.mrb[0].mxu0
    %730 = vmatprep.mubr.bf16.mxu0 0
    %731 = vmatmul.mubr.bf16.gmra.mrb[0].mxu0 %v596
    %v732 = vpop.f32.mrb[0].mxu0
    %v733 = vadd.f32 0.0, %v732
    %v734 = vpop.f32.mrb[0].mxu0
    %v735 = vpop.f32.mrb[0].mxu0
    %v736 = vadd.f32 0.0, %v735
    %v737 = vpop.f32.mrb[0].mxu0
    %738 = vmatprep.mubr.bf16.mxu0 0
    %739 = vmatmul.mubr.bf16.gmra.mrb[0].mxu0 %v599
    %v740 = vpop.f32.mrb[0].mxu0
    %v741 = vadd.f32 0.0, %v740
    %v742 = vpop.f32.mrb[0].mxu0
    %v743 = vpop.f32.mrb[0].mxu0
    %v744 = vadd.f32 0.0, %v743
    %v745 = vpop.f32.mrb[0].mxu0
    %746 = vmatprep.mubr.bf16.mxu0 0
    %747 = vmatmul.mubr.bf16.gmra.mrb[0].mxu0 %v602
    %v748 = vpop.f32.mrb[0].mxu0
    %v749 = vadd.f32 0.0, %v748
    %v750 = vpop.f32.mrb[0].mxu0
    %v751 = vpop.f32.mrb[0].mxu0
    %v752 = vadd.f32 0.0, %v751
    %v753 = vpop.f32.mrb[0].mxu0
    %754 = vmatprep.mubr.bf16.mxu0 0
    %755 = vmatmul.mubr.bf16.gmra.mrb[0].mxu0 %v605
    %v756 = vpop.f32.mrb[0].mxu0
    %v757 = vadd.f32 0.0, %v756
    %v758 = vpop.f32.mrb[0].mxu0
    %v759 = vpop.f32.mrb[0].mxu0
    %v760 = vadd.f32 0.0, %v759
    %v761 = vpop.f32.mrb[0].mxu0
    %762 = vmatprep.mubr.bf16.mxu0 0
    %763 = vmatmul.mubr.bf16.gmra.mrb[0].mxu0 %v608
    %v764 = vpop.f32.mrb[0].mxu0
    %v765 = vadd.f32 0.0, %v764
    %v766 = vpop.f32.mrb[0].mxu0
    %v767 = vpop.f32.mrb[0].mxu0
    %v768 = vadd.f32 0.0, %v767
    %v769 = vpop.f32.mrb[0].mxu0
    %770 = vdwg.mxu0
    %v771 = vld [vmem:[%s4] sm:$0xff]
    %v772 = vld [vmem:[%s4 + $0x8] sm:$0xff]
    %v773 = vld [vmem:[%s4 + $0x10] sm:$0xff]
    %v774 = vld [vmem:[%s4 + $0x18] sm:$0xff]
    %v775 = vld [vmem:[%s4 + $0x20] sm:$0xff]
    %v776 = vld [vmem:[%s4 + $0x28] sm:$0xff]
    %v777 = vld [vmem:[%s4 + $0x30] sm:$0xff]
    %v778 = vld [vmem:[%s4 + $0x38] sm:$0xff]
    %v779 = vld [vmem:[%s4 + $0x40] sm:$0xff]
    %v780 = vld [vmem:[%s4 + $0x48] sm:$0xff]
    %v781 = vld [vmem:[%s4 + $0x50] sm:$0xff]
    %v782 = vld [vmem:[%s4 + $0x58] sm:$0xff]
    %v783 = vld [vmem:[%s4 + $0x60] sm:$0xff]
    %v784 = vld [vmem:[%s4 + $0x68] sm:$0xff]
    %v785 = vld [vmem:[%s4 + $0x70] sm:$0xff]
    %v786 = vld [vmem:[%s4 + $0x78] sm:$0xff]
    %v787 = vld [vmem:[%s4 + $0x80] sm:$0xff]
    %v788 = vld [vmem:[%s4 + $0x88] sm:$0xff]
    %v789 = vld [vmem:[%s4 + $0x90] sm:$0xff]
    %v790 = vld [vmem:[%s4 + $0x98] sm:$0xff]
    %v791 = vld [vmem:[%s4 + $0xa0] sm:$0xff]
    %v792 = vld [vmem:[%s4 + $0xa8] sm:$0xff]
    %v793 = vld [vmem:[%s4 + $0xb0] sm:$0xff]
    %v794 = vld [vmem:[%s4 + $0xb8] sm:$0xff]
    %v795 = vld [vmem:[%s4 + $0xc0] sm:$0xff]
    %v796 = vld [vmem:[%s4 + $0xc8] sm:$0xff]
    %v797 = vld [vmem:[%s4 + $0xd0] sm:$0xff]
    %v798 = vld [vmem:[%s4 + $0xd8] sm:$0xff]
    %v799 = vld [vmem:[%s4 + $0xe0] sm:$0xff]
    %v800 = vld [vmem:[%s4 + $0xe8] sm:$0xff]
    %v801 = vld [vmem:[%s4 + $0xf0] sm:$0xff]
    %v802 = vld [vmem:[%s4 + $0xf8] sm:$0xff]
    %v803 = vpack.c.bf16 %v772, %v771
    %v804 = vpack.c.bf16 %v774, %v773
    %v805 = vpack.c.bf16 %v776, %v775
    %v806 = vpack.c.bf16 %v778, %v777
    %v807 = vpack.c.bf16 %v780, %v779
    %v808 = vpack.c.bf16 %v782, %v781
    %v809 = vpack.c.bf16 %v784, %v783
    %v810 = vpack.c.bf16 %v786, %v785
    %v811 = vpack.c.bf16 %v788, %v787
    %v812 = vpack.c.bf16 %v790, %v789
    %v813 = vpack.c.bf16 %v792, %v791
    %v814 = vpack.c.bf16 %v794, %v793
    %v815 = vpack.c.bf16 %v796, %v795
    %v816 = vpack.c.bf16 %v798, %v797
    %v817 = vpack.c.bf16 %v800, %v799
    %v818 = vpack.c.bf16 %v802, %v801
    %v819 = vld [vmem:[%s8] sm:$0xf]
    %v820 = vld [vmem:[%s8 + $0x4] sm:$0xf]
    %v821 = vld [vmem:[%s8 + $0x8] sm:$0xf]
    %v822 = vld [vmem:[%s8 + $0xc] sm:$0xf]
    %v827 = vunpack.c.l.b16 %v819
    %v828 = vunpack.c.l.b16 %v820
    %v829 = vunpack.c.l.b16 %v821
    %v830 = vunpack.c.l.b16 %v822
    %v831 = vpack.c.b16 %v828, %v827
    %v832 = vpack.c.b16 %v830, %v829
    %v836 = vsel %vm288, %v803, 0
    %v839 = vsel %vm288, %v804, 0
    %v842 = vsel %vm288, %v805, 0
    %v845 = vsel %vm288, %v806, 0
    %v848 = vsel %vm288, %v807, 0
    %v851 = vsel %vm288, %v808, 0
    %v854 = vsel %vm288, %v809, 0
    %v857 = vsel %vm288, %v810, 0
    %v860 = vsel %vm288, %v811, 0
    %v863 = vsel %vm288, %v812, 0
    %v866 = vsel %vm288, %v813, 0
    %v869 = vsel %vm288, %v814, 0
    %v872 = vsel %vm288, %v815, 0
    %v875 = vsel %vm288, %v816, 0
    %v878 = vsel %vm288, %v817, 0
    %v881 = vsel %vm288, %v818, 0
    %883 = vmatprep.subr.bf16.mxu0 0
    %884 = vmatpush1.bf16.msra.mxu0 %v831
    %885 = vmatprep.subr.bf16.mxu0 0
    %886 = vmatpush1.bf16.msra.mxu0 %v832
    %887 = vmatprep.subr.bf16.mxu0 0
    %888 = vmatpush1.bf16.msra.mxu0 0
    %889 = vmatprep.subr.bf16.mxu0 0
    %890 = vmatpush1.bf16.msra.mxu0 0
    %891 = vmatprep.subr.bf16.mxu0 0
    %892 = vmatpush1.bf16.msra.mxu0 0
    %893 = vmatprep.subr.bf16.mxu0 0
    %894 = vmatpush1.bf16.msra.mxu0 0
    %895 = vmatprep.subr.bf16.mxu0 0
    %896 = vmatpush1.bf16.msra.mxu0 0
    %897 = vmatprep.subr.bf16.mxu0 0
    %898 = vmatpush1.bf16.msra.mxu0 0
    %899 = vmatprep.subr.bf16.mxu0 0
    %900 = vmatpush1.bf16.msra.mxu0 0
    %901 = vmatprep.subr.bf16.mxu0 0
    %902 = vmatpush1.bf16.msra.mxu0 0
    %903 = vmatprep.subr.bf16.mxu0 0
    %904 = vmatpush1.bf16.msra.mxu0 0
    %905 = vmatprep.subr.bf16.mxu0 0
    %906 = vmatpush1.bf16.msra.mxu0 0
    %907 = vmatprep.subr.bf16.mxu0 0
    %908 = vmatpush1.bf16.msra.mxu0 0
    %909 = vmatprep.subr.bf16.mxu0 0
    %910 = vmatpush1.bf16.msra.mxu0 0
    %911 = vmatprep.subr.bf16.mxu0 0
    %912 = vmatpush1.bf16.msra.mxu0 0
    %913 = vmatprep.subr.bf16.mxu0 0
    %914 = vmatpush1.bf16.msra.mxu0 0
    %915 = vmatprep.mubr.bf16.mxu0 0
    %916 = vmatmul.mubr.bf16.gmra.mrb[0].mxu0 %v836
    %v917 = vpop.f32.mrb[0].mxu0
    %v918 = vadd.f32 0.0, %v917
    %v919 = vpop.f32.mrb[0].mxu0
    %v920 = vpop.f32.mrb[0].mxu0
    %v921 = vadd.f32 0.0, %v920
    %v922 = vpop.f32.mrb[0].mxu0
    %923 = vmatprep.mubr.bf16.mxu0 0
    %924 = vmatmul.mubr.bf16.gmra.mrb[0].mxu0 %v839
    %v925 = vpop.f32.mrb[0].mxu0
    %v926 = vadd.f32 0.0, %v925
    %v927 = vpop.f32.mrb[0].mxu0
    %v928 = vpop.f32.mrb[0].mxu0
    %v929 = vadd.f32 0.0, %v928
    %v930 = vpop.f32.mrb[0].mxu0
    %931 = vmatprep.mubr.bf16.mxu0 0
    %932 = vmatmul.mubr.bf16.gmra.mrb[0].mxu0 %v842
    %v933 = vpop.f32.mrb[0].mxu0
    %v934 = vadd.f32 0.0, %v933
    %v935 = vpop.f32.mrb[0].mxu0
    %v936 = vpop.f32.mrb[0].mxu0
    %v937 = vadd.f32 0.0, %v936
    %v938 = vpop.f32.mrb[0].mxu0
    %939 = vmatprep.mubr.bf16.mxu0 0
    %940 = vmatmul.mubr.bf16.gmra.mrb[0].mxu0 %v845
    %v941 = vpop.f32.mrb[0].mxu0
    %v942 = vadd.f32 0.0, %v941
    %v943 = vpop.f32.mrb[0].mxu0
    %v944 = vpop.f32.mrb[0].mxu0
    %v945 = vadd.f32 0.0, %v944
    %v946 = vpop.f32.mrb[0].mxu0
    %947 = vmatprep.mubr.bf16.mxu0 0
    %948 = vmatmul.mubr.bf16.gmra.mrb[0].mxu0 %v848
    %v949 = vpop.f32.mrb[0].mxu0
    %v950 = vadd.f32 0.0, %v949
    %v951 = vpop.f32.mrb[0].mxu0
    %v952 = vpop.f32.mrb[0].mxu0
    %v953 = vadd.f32 0.0, %v952
    %v954 = vpop.f32.mrb[0].mxu0
    %955 = vmatprep.mubr.bf16.mxu0 0
    %956 = vmatmul.mubr.bf16.gmra.mrb[0].mxu0 %v851
    %v957 = vpop.f32.mrb[0].mxu0
    %v958 = vadd.f32 0.0, %v957
    %v959 = vpop.f32.mrb[0].mxu0
    %v960 = vpop.f32.mrb[0].mxu0
    %v961 = vadd.f32 0.0, %v960
    %v962 = vpop.f32.mrb[0].mxu0
    %963 = vmatprep.mubr.bf16.mxu0 0
    %964 = vmatmul.mubr.bf16.gmra.mrb[0].mxu0 %v854
    %v965 = vpop.f32.mrb[0].mxu0
    %v966 = vadd.f32 0.0, %v965
    %v967 = vpop.f32.mrb[0].mxu0
    %v968 = vpop.f32.mrb[0].mxu0
    %v969 = vadd.f32 0.0, %v968
    %v970 = vpop.f32.mrb[0].mxu0
    %971 = vmatprep.mubr.bf16.mxu0 0
    %972 = vmatmul.mubr.bf16.gmra.mrb[0].mxu0 %v857
    %v973 = vpop.f32.mrb[0].mxu0
    %v974 = vadd.f32 0.0, %v973
    %v975 = vpop.f32.mrb[0].mxu0
    %v976 = vpop.f32.mrb[0].mxu0
    %v977 = vadd.f32 0.0, %v976
    %v978 = vpop.f32.mrb[0].mxu0
    %979 = vmatprep.mubr.bf16.mxu0 0
    %980 = vmatmul.mubr.bf16.gmra.mrb[0].mxu0 %v860
    %v981 = vpop.f32.mrb[0].mxu0
    %v982 = vadd.f32 0.0, %v981
    %v983 = vpop.f32.mrb[0].mxu0
    %v984 = vpop.f32.mrb[0].mxu0
    %v985 = vadd.f32 0.0, %v984
    %v986 = vpop.f32.mrb[0].mxu0
    %987 = vmatprep.mubr.bf16.mxu0 0
    %988 = vmatmul.mubr.bf16.gmra.mrb[0].mxu0 %v863
    %v989 = vpop.f32.mrb[0].mxu0
    %v990 = vadd.f32 0.0, %v989
    %v991 = vpop.f32.mrb[0].mxu0
    %v992 = vpop.f32.mrb[0].mxu0
    %v993 = vadd.f32 0.0, %v992
    %v994 = vpop.f32.mrb[0].mxu0
    %995 = vmatprep.mubr.bf16.mxu0 0
    %996 = vmatmul.mubr.bf16.gmra.mrb[0].mxu0 %v866
    %v997 = vpop.f32.mrb[0].mxu0
    %v998 = vadd.f32 0.0, %v997
    %v999 = vpop.f32.mrb[0].mxu0
    %v1000 = vpop.f32.mrb[0].mxu0
    %v1001 = vadd.f32 0.0, %v1000
    %v1002 = vpop.f32.mrb[0].mxu0
    %1003 = vmatprep.mubr.bf16.mxu0 0
    %1004 = vmatmul.mubr.bf16.gmra.mrb[0].mxu0 %v869
    %v1005 = vpop.f32.mrb[0].mxu0
    %v1006 = vadd.f32 0.0, %v1005
    %v1007 = vpop.f32.mrb[0].mxu0
    %v1008 = vpop.f32.mrb[0].mxu0
    %v1009 = vadd.f32 0.0, %v1008
    %v1010 = vpop.f32.mrb[0].mxu0
    %1011 = vmatprep.mubr.bf16.mxu0 0
    %1012 = vmatmul.mubr.bf16.gmra.mrb[0].mxu0 %v872
    %v1013 = vpop.f32.mrb[0].mxu0
    %v1014 = vadd.f32 0.0, %v1013
    %v1015 = vpop.f32.mrb[0].mxu0
    %v1016 = vpop.f32.mrb[0].mxu0
    %v1017 = vadd.f32 0.0, %v1016
    %v1018 = vpop.f32.mrb[0].mxu0
    %1019 = vmatprep.mubr.bf16.mxu0 0
    %1020 = vmatmul.mubr.bf16.gmra.mrb[0].mxu0 %v875
    %v1021 = vpop.f32.mrb[0].mxu0
    %v1022 = vadd.f32 0.0, %v1021
    %v1023 = vpop.f32.mrb[0].mxu0
    %v1024 = vpop.f32.mrb[0].mxu0
    %v1025 = vadd.f32 0.0, %v1024
    %v1026 = vpop.f32.mrb[0].mxu0
    %1027 = vmatprep.mubr.bf16.mxu0 0
    %1028 = vmatmul.mubr.bf16.gmra.mrb[0].mxu0 %v878
    %v1029 = vpop.f32.mrb[0].mxu0
    %v1030 = vadd.f32 0.0, %v1029
    %v1031 = vpop.f32.mrb[0].mxu0
    %v1032 = vpop.f32.mrb[0].mxu0
    %v1033 = vadd.f32 0.0, %v1032
    %v1034 = vpop.f32.mrb[0].mxu0
    %1035 = vmatprep.mubr.bf16.mxu0 0
    %1036 = vmatmul.mubr.bf16.gmra.mrb[0].mxu0 %v881
    %v1037 = vpop.f32.mrb[0].mxu0
    %v1038 = vadd.f32 0.0, %v1037
    %v1039 = vpop.f32.mrb[0].mxu0
    %v1040 = vpop.f32.mrb[0].mxu0
    %v1041 = vadd.f32 0.0, %v1040
    %v1042 = vpop.f32.mrb[0].mxu0
    %1043 = vdwg.mxu0
    %1045 = vset.pattern.permute.xlu0 0
    %1046 = vperm.xlu0 %1045, %v94
    %v1047 = vpop.permute.xlu0 %1046
    %1050 = vset.pattern.permute.xlu0 0
    %1051 = vperm.xlu0 %1050, %v95
    %v1052 = vpop.permute.xlu0 %1051
    %1055 = vset.pattern.permute.xlu0 0
    %1056 = vperm.xlu0 %1055, %v96
    %v1057 = vpop.permute.xlu0 %1056
    %1060 = vset.pattern.permute.xlu0 0
    %1061 = vperm.xlu0 %1060, %v97
    %v1062 = vpop.permute.xlu0 %1061
    %1065 = vset.pattern.permute.xlu0 0
    %1066 = vperm.xlu0 %1065, %v98
    %v1067 = vpop.permute.xlu0 %1066
    %1070 = vset.pattern.permute.xlu0 0
    %1071 = vperm.xlu0 %1070, %v99
    %v1072 = vpop.permute.xlu0 %1071
    %1075 = vset.pattern.permute.xlu0 0
    %1076 = vperm.xlu0 %1075, %v100
    %v1077 = vpop.permute.xlu0 %1076
    %1080 = vset.pattern.permute.xlu0 0
    %1081 = vperm.xlu0 %1080, %v101
    %v1082 = vpop.permute.xlu0 %1081
    %1085 = vset.pattern.permute.xlu0 0
    %1086 = vperm.xlu0 %1085, %v102
    %v1087 = vpop.permute.xlu0 %1086
    %1090 = vset.pattern.permute.xlu0 0
    %1091 = vperm.xlu0 %1090, %v103
    %v1092 = vpop.permute.xlu0 %1091
    %1095 = vset.pattern.permute.xlu0 0
    %1096 = vperm.xlu0 %1095, %v104
    %v1097 = vpop.permute.xlu0 %1096
    %1100 = vset.pattern.permute.xlu0 0
    %1101 = vperm.xlu0 %1100, %v105
    %v1102 = vpop.permute.xlu0 %1101
    %1105 = vset.pattern.permute.xlu0 0
    %1106 = vperm.xlu0 %1105, %v106
    %v1107 = vpop.permute.xlu0 %1106
    %1110 = vset.pattern.permute.xlu0 0
    %1111 = vperm.xlu0 %1110, %v107
    %v1112 = vpop.permute.xlu0 %1111
    %1115 = vset.pattern.permute.xlu0 0
    %1116 = vperm.xlu0 %1115, %v108
    %v1117 = vpop.permute.xlu0 %1116
    %1120 = vset.pattern.permute.xlu0 0
    %1121 = vperm.xlu0 %1120, %v109
    %v1122 = vpop.permute.xlu0 %1121
    %1125 = vset.pattern.permute.xlu0 0
    %1126 = vperm.xlu0 %1125, %v126
    %v1127 = vpop.permute.xlu0 %1126
    %1130 = vset.pattern.permute.xlu0 0
    %1131 = vperm.xlu0 %1130, %v127
    %v1132 = vpop.permute.xlu0 %1131
    %1135 = vset.pattern.permute.xlu0 0
    %1136 = vperm.xlu0 %1135, %v128
    %v1137 = vpop.permute.xlu0 %1136
    %1140 = vset.pattern.permute.xlu0 0
    %1141 = vperm.xlu0 %1140, %v129
    %v1142 = vpop.permute.xlu0 %1141
    %1145 = vset.pattern.permute.xlu0 0
    %1146 = vperm.xlu0 %1145, %v130
    %v1147 = vpop.permute.xlu0 %1146
    %1150 = vset.pattern.permute.xlu0 0
    %1151 = vperm.xlu0 %1150, %v131
    %v1152 = vpop.permute.xlu0 %1151
    %1155 = vset.pattern.permute.xlu0 0
    %1156 = vperm.xlu0 %1155, %v132
    %v1157 = vpop.permute.xlu0 %1156
    %1160 = vset.pattern.permute.xlu0 0
    %1161 = vperm.xlu0 %1160, %v133
    %v1162 = vpop.permute.xlu0 %1161
    %1165 = vset.pattern.permute.xlu0 0
    %1166 = vperm.xlu0 %1165, %v134
    %v1167 = vpop.permute.xlu0 %1166
    %1170 = vset.pattern.permute.xlu0 0
    %1171 = vperm.xlu0 %1170, %v135
    %v1172 = vpop.permute.xlu0 %1171
    %1175 = vset.pattern.permute.xlu0 0
    %1176 = vperm.xlu0 %1175, %v136
    %v1177 = vpop.permute.xlu0 %1176
    %1180 = vset.pattern.permute.xlu0 0
    %1181 = vperm.xlu0 %1180, %v137
    %v1182 = vpop.permute.xlu0 %1181
    %1185 = vset.pattern.permute.xlu0 0
    %1186 = vperm.xlu0 %1185, %v138
    %v1187 = vpop.permute.xlu0 %1186
    %1190 = vset.pattern.permute.xlu0 0
    %1191 = vperm.xlu0 %1190, %v139
    %v1192 = vpop.permute.xlu0 %1191
    %1195 = vset.pattern.permute.xlu0 0
    %1196 = vperm.xlu0 %1195, %v140
    %v1197 = vpop.permute.xlu0 %1196
    %1200 = vset.pattern.permute.xlu0 0
    %1201 = vperm.xlu0 %1200, %v141
    %v1202 = vpop.permute.xlu0 %1201
    %v1204 = vmul.f32 %v1047, %v645
    %v1205 = vmul.f32 %v1052, %v648
    %v1206 = vmul.f32 %v1057, %v653
    %v1207 = vmul.f32 %v1062, %v656
    %v1208 = vmul.f32 %v1067, %v661
    %v1209 = vmul.f32 %v1072, %v664
    %v1210 = vmul.f32 %v1077, %v669
    %v1211 = vmul.f32 %v1082, %v672
    %v1212 = vmul.f32 %v1087, %v677
    %v1213 = vmul.f32 %v1092, %v680
    %v1214 = vmul.f32 %v1097, %v685
    %v1215 = vmul.f32 %v1102, %v688
    %v1216 = vmul.f32 %v1107, %v693
    %v1217 = vmul.f32 %v1112, %v696
    %v1218 = vmul.f32 %v1117, %v701
    %v1219 = vmul.f32 %v1122, %v704
    %v1220 = vmul.f32 %v1127, %v709
    %v1221 = vmul.f32 %v1132, %v712
    %v1222 = vmul.f32 %v1137, %v717
    %v1223 = vmul.f32 %v1142, %v720
    %v1224 = vmul.f32 %v1147, %v725
    %v1225 = vmul.f32 %v1152, %v728
    %v1226 = vmul.f32 %v1157, %v733
    %v1227 = vmul.f32 %v1162, %v736
    %v1228 = vmul.f32 %v1167, %v741
    %v1229 = vmul.f32 %v1172, %v744
    %v1230 = vmul.f32 %v1177, %v749
    %v1231 = vmul.f32 %v1182, %v752
    %v1232 = vmul.f32 %v1187, %v757
    %v1233 = vmul.f32 %v1192, %v760
    %v1234 = vmul.f32 %v1197, %v765
    %v1235 = vmul.f32 %v1202, %v768
    %1237 = vset.pattern.permute.xlu0 0
    %1238 = vperm.xlu0 %1237, %v169
    %v1239 = vpop.permute.xlu0 %1238
    %1242 = vset.pattern.permute.xlu0 0
    %1243 = vperm.xlu0 %1242, %v170
    %v1244 = vpop.permute.xlu0 %1243
    %1247 = vset.pattern.permute.xlu0 0
    %1248 = vperm.xlu0 %1247, %v171
    %v1249 = vpop.permute.xlu0 %1248
    %1252 = vset.pattern.permute.xlu0 0
    %1253 = vperm.xlu0 %1252, %v172
    %v1254 = vpop.permute.xlu0 %1253
    %1257 = vset.pattern.permute.xlu0 0
    %1258 = vperm.xlu0 %1257, %v173
    %v1259 = vpop.permute.xlu0 %1258
    %1262 = vset.pattern.permute.xlu0 0
    %1263 = vperm.xlu0 %1262, %v174
    %v1264 = vpop.permute.xlu0 %1263
    %1267 = vset.pattern.permute.xlu0 0
    %1268 = vperm.xlu0 %1267, %v175
    %v1269 = vpop.permute.xlu0 %1268
    %1272 = vset.pattern.permute.xlu0 0
    %1273 = vperm.xlu0 %1272, %v176
    %v1274 = vpop.permute.xlu0 %1273
    %1277 = vset.pattern.permute.xlu0 0
    %1278 = vperm.xlu0 %1277, %v177
    %v1279 = vpop.permute.xlu0 %1278
    %1282 = vset.pattern.permute.xlu0 0
    %1283 = vperm.xlu0 %1282, %v178
    %v1284 = vpop.permute.xlu0 %1283
    %1287 = vset.pattern.permute.xlu0 0
    %1288 = vperm.xlu0 %1287, %v179
    %v1289 = vpop.permute.xlu0 %1288
    %1292 = vset.pattern.permute.xlu0 0
    %1293 = vperm.xlu0 %1292, %v180
    %v1294 = vpop.permute.xlu0 %1293
    %1297 = vset.pattern.permute.xlu0 0
    %1298 = vperm.xlu0 %1297, %v181
    %v1299 = vpop.permute.xlu0 %1298
    %1302 = vset.pattern.permute.xlu0 0
    %1303 = vperm.xlu0 %1302, %v182
    %v1304 = vpop.permute.xlu0 %1303
    %1307 = vset.pattern.permute.xlu0 0
    %1308 = vperm.xlu0 %1307, %v183
    %v1309 = vpop.permute.xlu0 %1308
    %1312 = vset.pattern.permute.xlu0 0
    %1313 = vperm.xlu0 %1312, %v184
    %v1314 = vpop.permute.xlu0 %1313
    %1317 = vset.pattern.permute.xlu0 0
    %1318 = vperm.xlu0 %1317, %v201
    %v1319 = vpop.permute.xlu0 %1318
    %1322 = vset.pattern.permute.xlu0 0
    %1323 = vperm.xlu0 %1322, %v202
    %v1324 = vpop.permute.xlu0 %1323
    %1327 = vset.pattern.permute.xlu0 0
    %1328 = vperm.xlu0 %1327, %v203
    %v1329 = vpop.permute.xlu0 %1328
    %1332 = vset.pattern.permute.xlu0 0
    %1333 = vperm.xlu0 %1332, %v204
    %v1334 = vpop.permute.xlu0 %1333
    %1337 = vset.pattern.permute.xlu0 0
    %1338 = vperm.xlu0 %1337, %v205
    %v1339 = vpop.permute.xlu0 %1338
    %1342 = vset.pattern.permute.xlu0 0
    %1343 = vperm.xlu0 %1342, %v206
    %v1344 = vpop.permute.xlu0 %1343
    %1347 = vset.pattern.permute.xlu0 0
    %1348 = vperm.xlu0 %1347, %v207
    %v1349 = vpop.permute.xlu0 %1348
    %1352 = vset.pattern.permute.xlu0 0
    %1353 = vperm.xlu0 %1352, %v208
    %v1354 = vpop.permute.xlu0 %1353
    %1357 = vset.pattern.permute.xlu0 0
    %1358 = vperm.xlu0 %1357, %v209
    %v1359 = vpop.permute.xlu0 %1358
    %1362 = vset.pattern.permute.xlu0 0
    %1363 = vperm.xlu0 %1362, %v210
    %v1364 = vpop.permute.xlu0 %1363
    %1367 = vset.pattern.permute.xlu0 0
    %1368 = vperm.xlu0 %1367, %v211
    %v1369 = vpop.permute.xlu0 %1368
    %1372 = vset.pattern.permute.xlu0 0
    %1373 = vperm.xlu0 %1372, %v212
    %v1374 = vpop.permute.xlu0 %1373
    %1377 = vset.pattern.permute.xlu0 0
    %1378 = vperm.xlu0 %1377, %v213
    %v1379 = vpop.permute.xlu0 %1378
    %1382 = vset.pattern.permute.xlu0 0
    %1383 = vperm.xlu0 %1382, %v214
    %v1384 = vpop.permute.xlu0 %1383
    %1387 = vset.pattern.permute.xlu0 0
    %1388 = vperm.xlu0 %1387, %v215
    %v1389 = vpop.permute.xlu0 %1388
    %1392 = vset.pattern.permute.xlu0 0
    %1393 = vperm.xlu0 %1392, %v216
    %v1394 = vpop.permute.xlu0 %1393
    %v1396 = vmul.f32 %v1239, %v918
    %v1397 = vmul.f32 %v1244, %v921
    %v1398 = vmul.f32 %v1249, %v926
    %v1399 = vmul.f32 %v1254, %v929
    %v1400 = vmul.f32 %v1259, %v934
    %v1401 = vmul.f32 %v1264, %v937
    %v1402 = vmul.f32 %v1269, %v942
    %v1403 = vmul.f32 %v1274, %v945
    %v1404 = vmul.f32 %v1279, %v950
    %v1405 = vmul.f32 %v1284, %v953
    %v1406 = vmul.f32 %v1289, %v958
    %v1407 = vmul.f32 %v1294, %v961
    %v1408 = vmul.f32 %v1299, %v966
    %v1409 = vmul.f32 %v1304, %v969
    %v1410 = vmul.f32 %v1309, %v974
    %v1411 = vmul.f32 %v1314, %v977
    %v1412 = vmul.f32 %v1319, %v982
    %v1413 = vmul.f32 %v1324, %v985
    %v1414 = vmul.f32 %v1329, %v990
    %v1415 = vmul.f32 %v1334, %v993
    %v1416 = vmul.f32 %v1339, %v998
    %v1417 = vmul.f32 %v1344, %v1001
    %v1418 = vmul.f32 %v1349, %v1006
    %v1419 = vmul.f32 %v1354, %v1009
    %v1420 = vmul.f32 %v1359, %v1014
    %v1421 = vmul.f32 %v1364, %v1017
    %v1422 = vmul.f32 %v1369, %v1022
    %v1423 = vmul.f32 %v1374, %v1025
    %v1424 = vmul.f32 %v1379, %v1030
    %v1425 = vmul.f32 %v1384, %v1033
    %v1426 = vmul.f32 %v1389, %v1038
    %v1427 = vmul.f32 %v1394, %v1041
    %v1428 = vadd.f32 %v1204, %v1396
    %v1429 = vadd.f32 %v1205, %v1397
    %v1430 = vadd.f32 %v1206, %v1398
    %v1431 = vadd.f32 %v1207, %v1399
    %v1432 = vadd.f32 %v1208, %v1400
    %v1433 = vadd.f32 %v1209, %v1401
    %v1434 = vadd.f32 %v1210, %v1402
    %v1435 = vadd.f32 %v1211, %v1403
    %v1436 = vadd.f32 %v1212, %v1404
    %v1437 = vadd.f32 %v1213, %v1405
    %v1438 = vadd.f32 %v1214, %v1406
    %v1439 = vadd.f32 %v1215, %v1407
    %v1440 = vadd.f32 %v1216, %v1408
    %v1441 = vadd.f32 %v1217, %v1409
    %v1442 = vadd.f32 %v1218, %v1410
    %v1443 = vadd.f32 %v1219, %v1411
    %v1444 = vadd.f32 %v1220, %v1412
    %v1445 = vadd.f32 %v1221, %v1413
    %v1446 = vadd.f32 %v1222, %v1414
    %v1447 = vadd.f32 %v1223, %v1415
    %v1448 = vadd.f32 %v1224, %v1416
    %v1449 = vadd.f32 %v1225, %v1417
    %v1450 = vadd.f32 %v1226, %v1418
    %v1451 = vadd.f32 %v1227, %v1419
    %v1452 = vadd.f32 %v1228, %v1420
    %v1453 = vadd.f32 %v1229, %v1421
    %v1454 = vadd.f32 %v1230, %v1422
    %v1455 = vadd.f32 %v1231, %v1423
    %v1456 = vadd.f32 %v1232, %v1424
    %v1457 = vadd.f32 %v1233, %v1425
    %v1458 = vadd.f32 %v1234, %v1426
    %v1459 = vadd.f32 %v1235, %v1427
    %v1460 = vld [vmem:[%s9] sm:$0x1]
    %v1462 = vlaneseq
    %v1463 = vshrl.u32 %v1462, 7
    %v1464 = vsub.s32 0, %v1463
    %v1465 = vrot.slane %v1460, %v1464
    %v1467 = vadd.f32 %v1428, %v1465
    %v1468 = vadd.f32 %v1429, %v1465
    %v1469 = vadd.f32 %v1430, %v1465
    %v1470 = vadd.f32 %v1431, %v1465
    %v1471 = vadd.f32 %v1432, %v1465
    %v1472 = vadd.f32 %v1433, %v1465
    %v1473 = vadd.f32 %v1434, %v1465
    %v1474 = vadd.f32 %v1435, %v1465
    %v1475 = vadd.f32 %v1436, %v1465
    %v1476 = vadd.f32 %v1437, %v1465
    %v1477 = vadd.f32 %v1438, %v1465
    %v1478 = vadd.f32 %v1439, %v1465
    %v1479 = vadd.f32 %v1440, %v1465
    %v1480 = vadd.f32 %v1441, %v1465
    %v1481 = vadd.f32 %v1442, %v1465
    %v1482 = vadd.f32 %v1443, %v1465
    %v1483 = vadd.f32 %v1444, %v1465
    %v1484 = vadd.f32 %v1445, %v1465
    %v1485 = vadd.f32 %v1446, %v1465
    %v1486 = vadd.f32 %v1447, %v1465
    %v1487 = vadd.f32 %v1448, %v1465
    %v1488 = vadd.f32 %v1449, %v1465
    %v1489 = vadd.f32 %v1450, %v1465
    %v1490 = vadd.f32 %v1451, %v1465
    %v1491 = vadd.f32 %v1452, %v1465
    %v1492 = vadd.f32 %v1453, %v1465
    %v1493 = vadd.f32 %v1454, %v1465
    %v1494 = vadd.f32 %v1455, %v1465
    %v1495 = vadd.f32 %v1456, %v1465
    %v1496 = vadd.f32 %v1457, %v1465
    %v1497 = vadd.f32 %v1458, %v1465
    %v1498 = vadd.f32 %v1459, %v1465
    %vm1499 = vcmp.gt.f32.partialorder %v372, 0.0
    %vm1500 = vcmp.gt.f32.partialorder %v375, 0.0
    %vm1501 = vcmp.gt.f32.partialorder %v380, 0.0
    %vm1502 = vcmp.gt.f32.partialorder %v383, 0.0
    %vm1503 = vcmp.gt.f32.partialorder %v388, 0.0
    %vm1504 = vcmp.gt.f32.partialorder %v391, 0.0
    %vm1505 = vcmp.gt.f32.partialorder %v396, 0.0
    %vm1506 = vcmp.gt.f32.partialorder %v399, 0.0
    %vm1507 = vcmp.gt.f32.partialorder %v404, 0.0
    %vm1508 = vcmp.gt.f32.partialorder %v407, 0.0
    %vm1509 = vcmp.gt.f32.partialorder %v412, 0.0
    %vm1510 = vcmp.gt.f32.partialorder %v415, 0.0
    %vm1511 = vcmp.gt.f32.partialorder %v420, 0.0
    %vm1512 = vcmp.gt.f32.partialorder %v423, 0.0
    %vm1513 = vcmp.gt.f32.partialorder %v428, 0.0
    %vm1514 = vcmp.gt.f32.partialorder %v431, 0.0
    %vm1515 = vcmp.gt.f32.partialorder %v436, 0.0
    %vm1516 = vcmp.gt.f32.partialorder %v439, 0.0
    %vm1517 = vcmp.gt.f32.partialorder %v444, 0.0
    %vm1518 = vcmp.gt.f32.partialorder %v447, 0.0
    %vm1519 = vcmp.gt.f32.partialorder %v452, 0.0
    %vm1520 = vcmp.gt.f32.partialorder %v455, 0.0
    %vm1521 = vcmp.gt.f32.partialorder %v460, 0.0
    %vm1522 = vcmp.gt.f32.partialorder %v463, 0.0
    %vm1523 = vcmp.gt.f32.partialorder %v468, 0.0
    %vm1524 = vcmp.gt.f32.partialorder %v471, 0.0
    %vm1525 = vcmp.gt.f32.partialorder %v476, 0.0
    %vm1526 = vcmp.gt.f32.partialorder %v479, 0.0
    %vm1527 = vcmp.gt.f32.partialorder %v484, 0.0
    %vm1528 = vcmp.gt.f32.partialorder %v487, 0.0
    %vm1529 = vcmp.gt.f32.partialorder %v492, 0.0
    %vm1530 = vcmp.gt.f32.partialorder %v495, 0.0
    %v1531 = vmin.f32 %v372, 0.0
    %v1532 = vmin.f32 %v375, 0.0
    %v1533 = vmin.f32 %v380, 0.0
    %v1534 = vmin.f32 %v383, 0.0
    %v1535 = vmin.f32 %v388, 0.0
    %v1536 = vmin.f32 %v391, 0.0
    %v1537 = vmin.f32 %v396, 0.0
    %v1538 = vmin.f32 %v399, 0.0
    %v1539 = vmin.f32 %v404, 0.0
    %v1540 = vmin.f32 %v407, 0.0
    %v1541 = vmin.f32 %v412, 0.0
    %v1542 = vmin.f32 %v415, 0.0
    %v1543 = vmin.f32 %v420, 0.0
    %v1544 = vmin.f32 %v423, 0.0
    %v1545 = vmin.f32 %v428, 0.0
    %v1546 = vmin.f32 %v431, 0.0
    %v1547 = vmin.f32 %v436, 0.0
    %v1548 = vmin.f32 %v439, 0.0
    %v1549 = vmin.f32 %v444, 0.0
    %v1550 = vmin.f32 %v447, 0.0
    %v1551 = vmin.f32 %v452, 0.0
    %v1552 = vmin.f32 %v455, 0.0
    %v1553 = vmin.f32 %v460, 0.0
    %v1554 = vmin.f32 %v463, 0.0
    %v1555 = vmin.f32 %v468, 0.0
    %v1556 = vmin.f32 %v471, 0.0
    %v1557 = vmin.f32 %v476, 0.0
    %v1558 = vmin.f32 %v479, 0.0
    %v1559 = vmin.f32 %v484, 0.0
    %v1560 = vmin.f32 %v487, 0.0
    %v1561 = vmin.f32 %v492, 0.0
    %v1562 = vmin.f32 %v495, 0.0
    %v1563 = vmul.f32 %v1531, 1.442695
    %v1564 = vpow.pop %v1563
    %v1565 = vmul.f32 %v1532, 1.442695
    %v1566 = vpow.pop %v1565
    %v1567 = vmul.f32 %v1533, 1.442695
    %v1568 = vpow.pop %v1567
    %v1569 = vmul.f32 %v1534, 1.442695
    %v1570 = vpow.pop %v1569
    %v1571 = vmul.f32 %v1535, 1.442695
    %v1572 = vpow.pop %v1571
    %v1573 = vmul.f32 %v1536, 1.442695
    %v1574 = vpow.pop %v1573
    %v1575 = vmul.f32 %v1537, 1.442695
    %v1576 = vpow.pop %v1575
    %v1577 = vmul.f32 %v1538, 1.442695
    %v1578 = vpow.pop %v1577
    %v1579 = vmul.f32 %v1539, 1.442695
    %v1580 = vpow.pop %v1579
    %v1581 = vmul.f32 %v1540, 1.442695
    %v1582 = vpow.pop %v1581
    %v1583 = vmul.f32 %v1541, 1.442695
    %v1584 = vpow.pop %v1583
    %v1585 = vmul.f32 %v1542, 1.442695
    %v1586 = vpow.pop %v1585
    %v1587 = vmul.f32 %v1543, 1.442695
    %v1588 = vpow.pop %v1587
    %v1589 = vmul.f32 %v1544, 1.442695
    %v1590 = vpow.pop %v1589
    %v1591 = vmul.f32 %v1545, 1.442695
    %v1592 = vpow.pop %v1591
    %v1593 = vmul.f32 %v1546, 1.442695
    %v1594 = vpow.pop %v1593
    %v1595 = vmul.f32 %v1547, 1.442695
    %v1596 = vpow.pop %v1595
    %v1597 = vmul.f32 %v1548, 1.442695
    %v1598 = vpow.pop %v1597
    %v1599 = vmul.f32 %v1549, 1.442695
    %v1600 = vpow.pop %v1599
    %v1601 = vmul.f32 %v1550, 1.442695
    %v1602 = vpow.pop %v1601
    %v1603 = vmul.f32 %v1551, 1.442695
    %v1604 = vpow.pop %v1603
    %v1605 = vmul.f32 %v1552, 1.442695
    %v1606 = vpow.pop %v1605
    %v1607 = vmul.f32 %v1553, 1.442695
    %v1608 = vpow.pop %v1607
    %v1609 = vmul.f32 %v1554, 1.442695
    %v1610 = vpow.pop %v1609
    %v1611 = vmul.f32 %v1555, 1.442695
    %v1612 = vpow.pop %v1611
    %v1613 = vmul.f32 %v1556, 1.442695
    %v1614 = vpow.pop %v1613
    %v1615 = vmul.f32 %v1557, 1.442695
    %v1616 = vpow.pop %v1615
    %v1617 = vmul.f32 %v1558, 1.442695
    %v1618 = vpow.pop %v1617
    %v1619 = vmul.f32 %v1559, 1.442695
    %v1620 = vpow.pop %v1619
    %v1621 = vmul.f32 %v1560, 1.442695
    %v1622 = vpow.pop %v1621
    %v1623 = vmul.f32 %v1561, 1.442695
    %v1624 = vpow.pop %v1623
    %v1625 = vmul.f32 %v1562, 1.442695
    %v1626 = vpow.pop %v1625
    %v1627 = vsub.f32 %v1564, 1.0
    %v1628 = vsub.f32 %v1566, 1.0
    %v1629 = vsub.f32 %v1568, 1.0
    %v1630 = vsub.f32 %v1570, 1.0
    %v1631 = vsub.f32 %v1572, 1.0
    %v1632 = vsub.f32 %v1574, 1.0
    %v1633 = vsub.f32 %v1576, 1.0
    %v1634 = vsub.f32 %v1578, 1.0
    %v1635 = vsub.f32 %v1580, 1.0
    %v1636 = vsub.f32 %v1582, 1.0
    %v1637 = vsub.f32 %v1584, 1.0
    %v1638 = vsub.f32 %v1586, 1.0
    %v1639 = vsub.f32 %v1588, 1.0
    %v1640 = vsub.f32 %v1590, 1.0
    %v1641 = vsub.f32 %v1592, 1.0
    %v1642 = vsub.f32 %v1594, 1.0
    %v1643 = vsub.f32 %v1596, 1.0
    %v1644 = vsub.f32 %v1598, 1.0
    %v1645 = vsub.f32 %v1600, 1.0
    %v1646 = vsub.f32 %v1602, 1.0
    %v1647 = vsub.f32 %v1604, 1.0
    %v1648 = vsub.f32 %v1606, 1.0
    %v1649 = vsub.f32 %v1608, 1.0
    %v1650 = vsub.f32 %v1610, 1.0
    %v1651 = vsub.f32 %v1612, 1.0
    %v1652 = vsub.f32 %v1614, 1.0
    %v1653 = vsub.f32 %v1616, 1.0
    %v1654 = vsub.f32 %v1618, 1.0
    %v1655 = vsub.f32 %v1620, 1.0
    %v1656 = vsub.f32 %v1622, 1.0
    %v1657 = vsub.f32 %v1624, 1.0
    %v1658 = vsub.f32 %v1626, 1.0
    %v1659 = vsel %vm1499, %v372, %v1627
    %v1660 = vsel %vm1500, %v375, %v1628
    %v1661 = vsel %vm1501, %v380, %v1629
    %v1662 = vsel %vm1502, %v383, %v1630
    %v1663 = vsel %vm1503, %v388, %v1631
    %v1664 = vsel %vm1504, %v391, %v1632
    %v1665 = vsel %vm1505, %v396, %v1633
    %v1666 = vsel %vm1506, %v399, %v1634
    %v1667 = vsel %vm1507, %v404, %v1635
    %v1668 = vsel %vm1508, %v407, %v1636
    %v1669 = vsel %vm1509, %v412, %v1637
    %v1670 = vsel %vm1510, %v415, %v1638
    %v1671 = vsel %vm1511, %v420, %v1639
    %v1672 = vsel %vm1512, %v423, %v1640
    %v1673 = vsel %vm1513, %v428, %v1641
    %v1674 = vsel %vm1514, %v431, %v1642
    %v1675 = vsel %vm1515, %v436, %v1643
    %v1676 = vsel %vm1516, %v439, %v1644
    %v1677 = vsel %vm1517, %v444, %v1645
    %v1678 = vsel %vm1518, %v447, %v1646
    %v1679 = vsel %vm1519, %v452, %v1647
    %v1680 = vsel %vm1520, %v455, %v1648
    %v1681 = vsel %vm1521, %v460, %v1649
    %v1682 = vsel %vm1522, %v463, %v1650
    %v1683 = vsel %vm1523, %v468, %v1651
    %v1684 = vsel %vm1524, %v471, %v1652
    %v1685 = vsel %vm1525, %v476, %v1653
    %v1686 = vsel %vm1526, %v479, %v1654
    %v1687 = vsel %vm1527, %v484, %v1655
    %v1688 = vsel %vm1528, %v487, %v1656
    %v1689 = vsel %vm1529, %v492, %v1657
    %v1690 = vsel %vm1530, %v495, %v1658
    %vm1691 = vcmp.gt.f32.partialorder %v1467, 0.0
    %vm1692 = vcmp.gt.f32.partialorder %v1468, 0.0
    %vm1693 = vcmp.gt.f32.partialorder %v1469, 0.0
    %vm1694 = vcmp.gt.f32.partialorder %v1470, 0.0
    %vm1695 = vcmp.gt.f32.partialorder %v1471, 0.0
    %vm1696 = vcmp.gt.f32.partialorder %v1472, 0.0
    %vm1697 = vcmp.gt.f32.partialorder %v1473, 0.0
    %vm1698 = vcmp.gt.f32.partialorder %v1474, 0.0
    %vm1699 = vcmp.gt.f32.partialorder %v1475, 0.0
    %vm1700 = vcmp.gt.f32.partialorder %v1476, 0.0
    %vm1701 = vcmp.gt.f32.partialorder %v1477, 0.0
    %vm1702 = vcmp.gt.f32.partialorder %v1478, 0.0
    %vm1703 = vcmp.gt.f32.partialorder %v1479, 0.0
    %vm1704 = vcmp.gt.f32.partialorder %v1480, 0.0
    %vm1705 = vcmp.gt.f32.partialorder %v1481, 0.0
    %vm1706 = vcmp.gt.f32.partialorder %v1482, 0.0
    %vm1707 = vcmp.gt.f32.partialorder %v1483, 0.0
    %vm1708 = vcmp.gt.f32.partialorder %v1484, 0.0
    %vm1709 = vcmp.gt.f32.partialorder %v1485, 0.0
    %vm1710 = vcmp.gt.f32.partialorder %v1486, 0.0
    %vm1711 = vcmp.gt.f32.partialorder %v1487, 0.0
    %vm1712 = vcmp.gt.f32.partialorder %v1488, 0.0
    %vm1713 = vcmp.gt.f32.partialorder %v1489, 0.0
    %vm1714 = vcmp.gt.f32.partialorder %v1490, 0.0
    %vm1715 = vcmp.gt.f32.partialorder %v1491, 0.0
    %vm1716 = vcmp.gt.f32.partialorder %v1492, 0.0
    %vm1717 = vcmp.gt.f32.partialorder %v1493, 0.0
    %vm1718 = vcmp.gt.f32.partialorder %v1494, 0.0
    %vm1719 = vcmp.gt.f32.partialorder %v1495, 0.0
    %vm1720 = vcmp.gt.f32.partialorder %v1496, 0.0
    %vm1721 = vcmp.gt.f32.partialorder %v1497, 0.0
    %vm1722 = vcmp.gt.f32.partialorder %v1498, 0.0
    %v1723 = vmin.f32 %v1467, 0.0
    %v1724 = vmin.f32 %v1468, 0.0
    %v1725 = vmin.f32 %v1469, 0.0
    %v1726 = vmin.f32 %v1470, 0.0
    %v1727 = vmin.f32 %v1471, 0.0
    %v1728 = vmin.f32 %v1472, 0.0
    %v1729 = vmin.f32 %v1473, 0.0
    %v1730 = vmin.f32 %v1474, 0.0
    %v1731 = vmin.f32 %v1475, 0.0
    %v1732 = vmin.f32 %v1476, 0.0
    %v1733 = vmin.f32 %v1477, 0.0
    %v1734 = vmin.f32 %v1478, 0.0
    %v1735 = vmin.f32 %v1479, 0.0
    %v1736 = vmin.f32 %v1480, 0.0
    %v1737 = vmin.f32 %v1481, 0.0
    %v1738 = vmin.f32 %v1482, 0.0
    %v1739 = vmin.f32 %v1483, 0.0
    %v1740 = vmin.f32 %v1484, 0.0
    %v1741 = vmin.f32 %v1485, 0.0
    %v1742 = vmin.f32 %v1486, 0.0
    %v1743 = vmin.f32 %v1487, 0.0
    %v1744 = vmin.f32 %v1488, 0.0
    %v1745 = vmin.f32 %v1489, 0.0
    %v1746 = vmin.f32 %v1490, 0.0
    %v1747 = vmin.f32 %v1491, 0.0
    %v1748 = vmin.f32 %v1492, 0.0
    %v1749 = vmin.f32 %v1493, 0.0
    %v1750 = vmin.f32 %v1494, 0.0
    %v1751 = vmin.f32 %v1495, 0.0
    %v1752 = vmin.f32 %v1496, 0.0
    %v1753 = vmin.f32 %v1497, 0.0
    %v1754 = vmin.f32 %v1498, 0.0
    %v1755 = vmul.f32 %v1723, 1.442695
    %v1756 = vpow.pop %v1755
    %v1757 = vmul.f32 %v1724, 1.442695
    %v1758 = vpow.pop %v1757
    %v1759 = vmul.f32 %v1725, 1.442695
    %v1760 = vpow.pop %v1759
    %v1761 = vmul.f32 %v1726, 1.442695
    %v1762 = vpow.pop %v1761
    %v1763 = vmul.f32 %v1727, 1.442695
    %v1764 = vpow.pop %v1763
    %v1765 = vmul.f32 %v1728, 1.442695
    %v1766 = vpow.pop %v1765
    %v1767 = vmul.f32 %v1729, 1.442695
    %v1768 = vpow.pop %v1767
    %v1769 = vmul.f32 %v1730, 1.442695
    %v1770 = vpow.pop %v1769
    %v1771 = vmul.f32 %v1731, 1.442695
    %v1772 = vpow.pop %v1771
    %v1773 = vmul.f32 %v1732, 1.442695
    %v1774 = vpow.pop %v1773
    %v1775 = vmul.f32 %v1733, 1.442695
    %v1776 = vpow.pop %v1775
    %v1777 = vmul.f32 %v1734, 1.442695
    %v1778 = vpow.pop %v1777
    %v1779 = vmul.f32 %v1735, 1.442695
    %v1780 = vpow.pop %v1779
    %v1781 = vmul.f32 %v1736, 1.442695
    %v1782 = vpow.pop %v1781
    %v1783 = vmul.f32 %v1737, 1.442695
    %v1784 = vpow.pop %v1783
    %v1785 = vmul.f32 %v1738, 1.442695
    %v1786 = vpow.pop %v1785
    %v1787 = vmul.f32 %v1739, 1.442695
    %v1788 = vpow.pop %v1787
    %v1789 = vmul.f32 %v1740, 1.442695
    %v1790 = vpow.pop %v1789
    %v1791 = vmul.f32 %v1741, 1.442695
    %v1792 = vpow.pop %v1791
    %v1793 = vmul.f32 %v1742, 1.442695
    %v1794 = vpow.pop %v1793
    %v1795 = vmul.f32 %v1743, 1.442695
    %v1796 = vpow.pop %v1795
    %v1797 = vmul.f32 %v1744, 1.442695
    %v1798 = vpow.pop %v1797
    %v1799 = vmul.f32 %v1745, 1.442695
    %v1800 = vpow.pop %v1799
    %v1801 = vmul.f32 %v1746, 1.442695
    %v1802 = vpow.pop %v1801
    %v1803 = vmul.f32 %v1747, 1.442695
    %v1804 = vpow.pop %v1803
    %v1805 = vmul.f32 %v1748, 1.442695
    %v1806 = vpow.pop %v1805
    %v1807 = vmul.f32 %v1749, 1.442695
    %v1808 = vpow.pop %v1807
    %v1809 = vmul.f32 %v1750, 1.442695
    %v1810 = vpow.pop %v1809
    %v1811 = vmul.f32 %v1751, 1.442695
    %v1812 = vpow.pop %v1811
    %v1813 = vmul.f32 %v1752, 1.442695
    %v1814 = vpow.pop %v1813
    %v1815 = vmul.f32 %v1753, 1.442695
    %v1816 = vpow.pop %v1815
    %v1817 = vmul.f32 %v1754, 1.442695
    %v1818 = vpow.pop %v1817
    %v1819 = vsub.f32 %v1756, 1.0
    %v1820 = vsub.f32 %v1758, 1.0
    %v1821 = vsub.f32 %v1760, 1.0
    %v1822 = vsub.f32 %v1762, 1.0
    %v1823 = vsub.f32 %v1764, 1.0
    %v1824 = vsub.f32 %v1766, 1.0
    %v1825 = vsub.f32 %v1768, 1.0
    %v1826 = vsub.f32 %v1770, 1.0
    %v1827 = vsub.f32 %v1772, 1.0
    %v1828 = vsub.f32 %v1774, 1.0
    %v1829 = vsub.f32 %v1776, 1.0
    %v1830 = vsub.f32 %v1778, 1.0
    %v1831 = vsub.f32 %v1780, 1.0
    %v1832 = vsub.f32 %v1782, 1.0
    %v1833 = vsub.f32 %v1784, 1.0
    %v1834 = vsub.f32 %v1786, 1.0
    %v1835 = vsub.f32 %v1788, 1.0
    %v1836 = vsub.f32 %v1790, 1.0
    %v1837 = vsub.f32 %v1792, 1.0
    %v1838 = vsub.f32 %v1794, 1.0
    %v1839 = vsub.f32 %v1796, 1.0
    %v1840 = vsub.f32 %v1798, 1.0
    %v1841 = vsub.f32 %v1800, 1.0
    %v1842 = vsub.f32 %v1802, 1.0
    %v1843 = vsub.f32 %v1804, 1.0
    %v1844 = vsub.f32 %v1806, 1.0
    %v1845 = vsub.f32 %v1808, 1.0
    %v1846 = vsub.f32 %v1810, 1.0
    %v1847 = vsub.f32 %v1812, 1.0
    %v1848 = vsub.f32 %v1814, 1.0
    %v1849 = vsub.f32 %v1816, 1.0
    %v1850 = vsub.f32 %v1818, 1.0
    %v1851 = vsel %vm1691, %v1467, %v1819
    %v1852 = vsel %vm1692, %v1468, %v1820
    %v1853 = vsel %vm1693, %v1469, %v1821
    %v1854 = vsel %vm1694, %v1470, %v1822
    %v1855 = vsel %vm1695, %v1471, %v1823
    %v1856 = vsel %vm1696, %v1472, %v1824
    %v1857 = vsel %vm1697, %v1473, %v1825
    %v1858 = vsel %vm1698, %v1474, %v1826
    %v1859 = vsel %vm1699, %v1475, %v1827
    %v1860 = vsel %vm1700, %v1476, %v1828
    %v1861 = vsel %vm1701, %v1477, %v1829
    %v1862 = vsel %vm1702, %v1478, %v1830
    %v1863 = vsel %vm1703, %v1479, %v1831
    %v1864 = vsel %vm1704, %v1480, %v1832
    %v1865 = vsel %vm1705, %v1481, %v1833
    %v1866 = vsel %vm1706, %v1482, %v1834
    %v1867 = vsel %vm1707, %v1483, %v1835
    %v1868 = vsel %vm1708, %v1484, %v1836
    %v1869 = vsel %vm1709, %v1485, %v1837
    %v1870 = vsel %vm1710, %v1486, %v1838
    %v1871 = vsel %vm1711, %v1487, %v1839
    %v1872 = vsel %vm1712, %v1488, %v1840
    %v1873 = vsel %vm1713, %v1489, %v1841
    %v1874 = vsel %vm1714, %v1490, %v1842
    %v1875 = vsel %vm1715, %v1491, %v1843
    %v1876 = vsel %vm1716, %v1492, %v1844
    %v1877 = vsel %vm1717, %v1493, %v1845
    %v1878 = vsel %vm1718, %v1494, %v1846
    %v1879 = vsel %vm1719, %v1495, %v1847
    %v1880 = vsel %vm1720, %v1496, %v1848
    %v1881 = vsel %vm1721, %v1497, %v1849
    %v1882 = vsel %vm1722, %v1498, %v1850
    %v1883 = vadd.f32 %v1659, %v1851
    %v1884 = vadd.f32 %v1660, %v1852
    %v1885 = vadd.f32 %v1661, %v1853
    %v1886 = vadd.f32 %v1662, %v1854
    %v1887 = vadd.f32 %v1663, %v1855
    %v1888 = vadd.f32 %v1664, %v1856
    %v1889 = vadd.f32 %v1665, %v1857
    %v1890 = vadd.f32 %v1666, %v1858
    %v1891 = vadd.f32 %v1667, %v1859
    %v1892 = vadd.f32 %v1668, %v1860
    %v1893 = vadd.f32 %v1669, %v1861
    %v1894 = vadd.f32 %v1670, %v1862
    %v1895 = vadd.f32 %v1671, %v1863
    %v1896 = vadd.f32 %v1672, %v1864
    %v1897 = vadd.f32 %v1673, %v1865
    %v1898 = vadd.f32 %v1674, %v1866
    %v1899 = vadd.f32 %v1675, %v1867
    %v1900 = vadd.f32 %v1676, %v1868
    %v1901 = vadd.f32 %v1677, %v1869
    %v1902 = vadd.f32 %v1678, %v1870
    %v1903 = vadd.f32 %v1679, %v1871
    %v1904 = vadd.f32 %v1680, %v1872
    %v1905 = vadd.f32 %v1681, %v1873
    %v1906 = vadd.f32 %v1682, %v1874
    %v1907 = vadd.f32 %v1683, %v1875
    %v1908 = vadd.f32 %v1684, %v1876
    %v1909 = vadd.f32 %v1685, %v1877
    %v1910 = vadd.f32 %v1686, %v1878
    %v1911 = vadd.f32 %v1687, %v1879
    %v1912 = vadd.f32 %v1688, %v1880
    %v1913 = vadd.f32 %v1689, %v1881
    %v1914 = vadd.f32 %v1690, %v1882
    %1915 = vst.msk [vmem:[%s10] sm:$0xff] %vm288, %v1883
    %1916 = vst.msk [vmem:[%s10 + $0x8] sm:$0xff] %vm288, %v1884
    %1917 = vst.msk [vmem:[%s10 + $0x10] sm:$0xff] %vm288, %v1885
    %1918 = vst.msk [vmem:[%s10 + $0x18] sm:$0xff] %vm288, %v1886
    %1919 = vst.msk [vmem:[%s10 + $0x20] sm:$0xff] %vm288, %v1887
    %1920 = vst.msk [vmem:[%s10 + $0x28] sm:$0xff] %vm288, %v1888
    %1921 = vst.msk [vmem:[%s10 + $0x30] sm:$0xff] %vm288, %v1889
    %1922 = vst.msk [vmem:[%s10 + $0x38] sm:$0xff] %vm288, %v1890
    %1923 = vst.msk [vmem:[%s10 + $0x40] sm:$0xff] %vm288, %v1891
    %1924 = vst.msk [vmem:[%s10 + $0x48] sm:$0xff] %vm288, %v1892
    %1925 = vst.msk [vmem:[%s10 + $0x50] sm:$0xff] %vm288, %v1893
    %1926 = vst.msk [vmem:[%s10 + $0x58] sm:$0xff] %vm288, %v1894
    %1927 = vst.msk [vmem:[%s10 + $0x60] sm:$0xff] %vm288, %v1895
    %1928 = vst.msk [vmem:[%s10 + $0x68] sm:$0xff] %vm288, %v1896
    %1929 = vst.msk [vmem:[%s10 + $0x70] sm:$0xff] %vm288, %v1897
    %1930 = vst.msk [vmem:[%s10 + $0x78] sm:$0xff] %vm288, %v1898
    %1931 = vst.msk [vmem:[%s10 + $0x80] sm:$0xff] %vm288, %v1899
    %1932 = vst.msk [vmem:[%s10 + $0x88] sm:$0xff] %vm288, %v1900
    %1933 = vst.msk [vmem:[%s10 + $0x90] sm:$0xff] %vm288, %v1901
    %1934 = vst.msk [vmem:[%s10 + $0x98] sm:$0xff] %vm288, %v1902
    %1935 = vst.msk [vmem:[%s10 + $0xa0] sm:$0xff] %vm288, %v1903
    %1936 = vst.msk [vmem:[%s10 + $0xa8] sm:$0xff] %vm288, %v1904
    %1937 = vst.msk [vmem:[%s10 + $0xb0] sm:$0xff] %vm288, %v1905
    %1938 = vst.msk [vmem:[%s10 + $0xb8] sm:$0xff] %vm288, %v1906
    %1939 = vst.msk [vmem:[%s10 + $0xc0] sm:$0xff] %vm288, %v1907
    %1940 = vst.msk [vmem:[%s10 + $0xc8] sm:$0xff] %vm288, %v1908
    %1941 = vst.msk [vmem:[%s10 + $0xd0] sm:$0xff] %vm288, %v1909
    %1942 = vst.msk [vmem:[%s10 + $0xd8] sm:$0xff] %vm288, %v1910
    %1943 = vst.msk [vmem:[%s10 + $0xe0] sm:$0xff] %vm288, %v1911
    %1944 = vst.msk [vmem:[%s10 + $0xe8] sm:$0xff] %vm288, %v1912
    %1945 = vst.msk [vmem:[%s10 + $0xf0] sm:$0xff] %vm288, %v1913
    %1946 = vst.msk [vmem:[%s10 + $0xf8] sm:$0xff] %vm288, %v1914
    // Predicated region
    $region46: #{tpu_custom_call.1} parent=1 // pred_check
      _
    $region47: #{tpu_custom_call.1} parent=1 // pred_check_branch
      %1948 = sbr.rel (0) target = $region49
    $region48: #{tpu_custom_call.1} parent=1 // pred_region
      _
    $region49: #{tpu_custom_call.1} parent=1 // pred_fallthru
      _
    // Predicated region
    $region50: #{tpu_custom_call.1} parent=1 // pred_check
      _
    $region51: #{tpu_custom_call.1} parent=1 // pred_check_branch
      %1950 = sbr.rel (0) target = $region53
    $region52: #{tpu_custom_call.1} parent=1 // pred_region
      _
    $region53: #{tpu_custom_call.1} parent=1 // pred_fallthru
      _
    %1951 = vsyncpa [#allocation3], 1

</llo_original>
